<compile_context>
chip_gen: v6e
topology: v6e:2x2x1
jax: 0.10.0
libtpu: 0.0.40
codegen_flags: <defaults>
</compile_context>

<pallas_src>
import functools

import jax
import jax.numpy as jnp
from jax.experimental import pallas as pl
from jax.experimental.pallas import tpu as pltpu


NEG = -1e30
VMEM_SPEC = pl.BlockSpec(memory_space=pltpu.MemorySpace.VMEM)


# ------------------------------ fused kernel ------------------------------- #

def _gcn_fused_kernel(a_ref, x_ref, maskb_ref, cw_ref, lw_ref, b_ref,
                      o_ref, pooled_ref, *,
                      num_graphs, num_features, hidden):
    """Entire GCN forward in one launch; everything stays in VMEM/vregs."""
    a = a_ref[...]                      # (N, N) f32  symmetric-normalized adjacency
    x = x_ref[...]                      # (N, F) f32  node features
    bias = b_ref[...]                   # (8, 128) f32 packed biases (one vreg)

    # Packed weight slabs, sliced statically (all sublane offsets are multiples of 8).
    c1w = cw_ref[0:num_features, :]                        # (F, C)
    c2w = cw_ref[num_features:num_features + hidden, :]    # (C, C)
    l1w = lw_ref[0:hidden, :]                              # (C, 128)
    l2w = lw_ref[hidden:hidden + 128, :]                   # (128, 128)
    l3w = lw_ref[hidden + 128:hidden + 256, :]             # (128, 128) class-padded

    # --- conv1: relu((A_hat @ X) @ W1 + b1)   (reassociated: F < C) ---
    ax = jnp.dot(a, x, preferred_element_type=jnp.float32)                 # (N, F)
    h = jnp.dot(ax, c1w, preferred_element_type=jnp.float32) + bias[0:1, 0:hidden]
    h = jnp.maximum(h, 0.0)                                                # (N, C)

    # --- conv2: A_hat @ (H @ W2) + b2  (A_hat reused straight from VMEM) ---
    hw = jnp.dot(h, c2w, preferred_element_type=jnp.float32)               # (N, C)
    h2 = jnp.dot(a, hw, preferred_element_type=jnp.float32) + bias[1:2, 0:hidden]

    # --- global max pool: additive 0/-1e30 mask, per-graph sublane max -> scratch.
    # num_graphs is a small compile-time constant -> static unroll, no (B,N,C) tensor.
    maskb = maskb_ref[...]                                 # (N, B): 0 member, -1e30 not
    for g in range(num_graphs):
        pooled_ref[g:g + 1, :] = jnp.max(h2 + maskb[:, g:g + 1], axis=0, keepdims=True)
    pooled = pooled_ref[...]                               # (B, C)

    # --- MLP head: lin1 -> relu -> lin2 -> relu -> dropout(eval) -> lin ---
    z = jnp.maximum(
        jnp.dot(pooled, l1w, preferred_element_type=jnp.float32) + bias[2:3, :], 0.0)
    z = jnp.maximum(
        jnp.dot(z, l2w, preferred_element_type=jnp.float32) + bias[3:4, :], 0.0)
    # TODO(synk): F.dropout(p=0.5) modeled in eval mode (identity); training RNG mask omitted.
    logits = jnp.dot(z, l3w, preferred_element_type=jnp.float32) + bias[4:5, :]  # (B, 128)

    # --- softmax over the lane-padded class dim. Pad logits are -1e30 -> exp == 0,
    # so this is exactly softmax over the real classes (exact divide, matches torch).
    m = jnp.max(logits, axis=-1, keepdims=True)
    e = jnp.exp(logits - m)
    o_ref[...] = e / jnp.sum(e, axis=-1, keepdims=True)


def gcn_forward_fused(packed, x, a_hat, mask_bias, *,
                      num_graphs, num_classes, num_features, hidden):
    cw_slab, lw_slab, bias_slab = packed
    kernel = functools.partial(_gcn_fused_kernel, num_graphs=num_graphs,
                               num_features=num_features, hidden=hidden)
    out_padded = pl.pallas_call(
        kernel,
        in_specs=[VMEM_SPEC] * 6,
        out_specs=VMEM_SPEC,
        out_shape=jax.ShapeDtypeStruct((num_graphs, 128), jnp.float32),
        scratch_shapes=[pltpu.VMEM((num_graphs, hidden), jnp.float32)],
    )(a_hat, x, mask_bias, cw_slab, lw_slab, bias_slab)
    return out_padded[:, :num_classes]


# --------------------- graph preprocessing (hoisted, run once) -------------- #

def normalized_adjacency(edge_index, num_nodes):
    """Dense A_hat = D^-1/2 (A + I) D^-1/2 (PyG GCNConv normalization)."""
    a = jnp.zeros((num_nodes, num_nodes), jnp.float32)
    a = a.at[edge_index[0], edge_index[1]].set(1.0)
    a = a + jnp.eye(num_nodes, dtype=jnp.float32)
    deg = jnp.sum(a, axis=1)
    d_inv_sqrt = jnp.where(deg > 0, 1.0 / jnp.sqrt(deg), 0.0)
    return d_inv_sqrt[:, None] * a * d_inv_sqrt[None, :]


def preprocess_graph(edge_index, batch, num_nodes, num_graphs):
    """Computed once per graph structure (not per forward)."""
    a_hat = normalized_adjacency(edge_index, num_nodes)                      # (N, N) f32
    member = batch[:, None] == jnp.arange(num_graphs)[None, :]               # (N, B)
    mask_bias = jnp.where(member, 0.0, NEG).astype(jnp.float32)              # additive mask
    return a_hat, mask_bias


# ------------------------------ params & packing ---------------------------- #

def init_params(key, num_features, hidden_channels, num_classes):
    ks = jax.random.split(key, 5)

    def lin(k, fan_in, fan_out):
        bound = 1.0 / jnp.sqrt(jnp.float32(fan_in))
        kw, kb = jax.random.split(k)
        w = jax.random.uniform(kw, (fan_in, fan_out), jnp.float32, -bound, bound)
        b = jax.random.uniform(kb, (1, fan_out), jnp.float32, -bound, bound)
        return w, b

    p = {}
    p["conv1_w"], p["conv1_b"] = lin(ks[0], num_features, hidden_channels)
    p["conv2_w"], p["conv2_b"] = lin(ks[1], hidden_channels, hidden_channels)
    p["lin1_w"], p["lin1_b"] = lin(ks[2], hidden_channels, 128)
    p["lin2_w"], p["lin2_b"] = lin(ks[3], 128, 128)
    p["lin_w"], p["lin_b"] = lin(ks[4], 128, num_classes)
    return p


def pack_params(params, num_features, hidden, num_classes):
    """Pack 13 param arrays into 3 slabs (fewer, larger DMAs)."""
    # conv weights: (F + C, C)
    cw_slab = jnp.concatenate([params["conv1_w"], params["conv2_w"]], axis=0)
    # lin weights: (C + 128 + 128, 128); last lin's class dim padded to 128 lanes with 0
    lin_w_pad = jnp.zeros((128, 128), jnp.float32).at[:, :num_classes].set(params["lin_w"])
    lw_slab = jnp.concatenate([params["lin1_w"], params["lin2_w"], lin_w_pad], axis=0)
    # biases: one (8, 128) vreg; pad lanes of the classifier bias are -1e30 so padded
    # logits softmax to exactly 0.
    bias_slab = jnp.zeros((8, 128), jnp.float32)
    bias_slab = bias_slab.at[0, :hidden].set(params["conv1_b"][0])
    bias_slab = bias_slab.at[1, :hidden].set(params["conv2_b"][0])
    bias_slab = bias_slab.at[2, :].set(params["lin1_b"][0])
    bias_slab = bias_slab.at[3, :].set(params["lin2_b"][0])
    bias_slab = bias_slab.at[4, :].set(NEG)
    bias_slab = bias_slab.at[4, :num_classes].set(params["lin_b"][0])
    return cw_slab, lw_slab, bias_slab


# --------------------------------- reference -------------------------------- #

def gcn_forward_ref(params, x, a_hat, batch, num_graphs):
    """Pure-JAX f32 reference mirroring the PyTorch module's forward (eval mode)."""
    h = jnp.maximum(a_hat @ (x @ params["conv1_w"]) + params["conv1_b"], 0.0)
    h2 = a_hat @ (h @ params["conv2_w"]) + params["conv2_b"]
    pooled = jnp.stack(
        [jnp.max(jnp.where((batch == g)[:, None], h2, -jnp.inf), axis=0)
         for g in range(num_graphs)], axis=0)
    z = jnp.maximum(pooled @ params["lin1_w"] + params["lin1_b"], 0.0)
    z = jnp.maximum(z @ params["lin2_w"] + params["lin2_b"], 0.0)
    logits = z @ params["lin_w"] + params["lin_b"]
    return jax.nn.softmax(logits, axis=1)


# --------------------------------- driver ----------------------------------- #

if __name__ == "__main__":
    num_features = 8
    hidden_channels = 32
    num_classes = 4
    nodes_per_graph = 8
    num_graphs = 16                      # batched launch: 128 node rows, 16 head rows
    num_nodes = nodes_per_graph * num_graphs

    key = jax.random.PRNGKey(0)
    k_params, k_x = jax.random.split(key)

    params = init_params(k_params, num_features, hidden_channels, num_classes)
    packed = pack_params(params, num_features, hidden_channels, num_classes)
    x = jax.random.normal(k_x, (num_nodes, num_features), jnp.float32)

    # Deterministic bidirectional ring inside each graph (block-diagonal A_hat).
    src, dst = [], []
    for g in range(num_graphs):
        base = g * nodes_per_graph
        for i in range(nodes_per_graph):
            u = base + i
            v = base + (i + 1) % nodes_per_graph
            src += [u, v]
            dst += [v, u]
    edge_index = jnp.array([src, dst], dtype=jnp.int32)
    batch = jnp.repeat(jnp.arange(num_graphs, dtype=jnp.int32), nodes_per_graph)

    # Hoisted graph preprocessing (adjacency normalization + additive pooling mask).
    a_hat, mask_bias = preprocess_graph(edge_index, batch, num_nodes, num_graphs)

    fwd = jax.jit(functools.partial(gcn_forward_fused,
                                    num_graphs=num_graphs, num_classes=num_classes,
                                    num_features=num_features, hidden=hidden_channels))
    out = jax.block_until_ready(fwd(packed, x, a_hat, mask_bias))
    ref = jax.block_until_ready(gcn_forward_ref(params, x, a_hat, batch, num_graphs))

    assert out.shape == (num_graphs, num_classes)
    assert bool(jnp.all(jnp.isfinite(out)))
    # exact softmax divide -> rows sum to 1 tightly
    assert bool(jnp.all(jnp.abs(jnp.sum(out, axis=1) - 1.0) < 1e-5))
    # matches the pure-JAX / PyTorch-semantics reference
    assert bool(jnp.allclose(out, ref, atol=1e-4))
    print("KERNEL_OK")
</pallas_src>

<mosaic_0001>
module attributes {stable_mosaic.version = 11 : i64} {
  func.func @_gcn_fused_kernel(%arg0: memref<128x128xf32, #tpu.memory_space<vmem>>, %arg1: memref<128x8xf32, #tpu.memory_space<vmem>>, %arg2: memref<128x16xf32, #tpu.memory_space<vmem>>, %arg3: memref<40x32xf32, #tpu.memory_space<vmem>>, %arg4: memref<288x128xf32, #tpu.memory_space<vmem>>, %arg5: memref<8x128xf32, #tpu.memory_space<vmem>>, %arg6: memref<16x128xf32, #tpu.memory_space<vmem>>, %arg7: memref<16x32xf32, #tpu.memory_space<vmem>>) attributes {dimension_semantics = [], scalar_prefetch = 0 : i64, scratch_operands = 1 : i64, tpu.core_type = #tpu.core_type<tc>} {
    %c0 = arith.constant 0 : index
    %c0_0 = arith.constant 0 : index
    %0 = vector.load %arg0[%c0, %c0_0] : memref<128x128xf32, #tpu.memory_space<vmem>>, vector<128x128xf32>
    %c0_1 = arith.constant 0 : index
    %c0_2 = arith.constant 0 : index
    %1 = vector.load %arg1[%c0_1, %c0_2] : memref<128x8xf32, #tpu.memory_space<vmem>>, vector<128x8xf32>
    %c0_3 = arith.constant 0 : index
    %c0_4 = arith.constant 0 : index
    %2 = vector.load %arg5[%c0_3, %c0_4] : memref<8x128xf32, #tpu.memory_space<vmem>>, vector<8x128xf32>
    %c0_5 = arith.constant 0 : index
    %c0_6 = arith.constant 0 : index
    %3 = vector.load %arg3[%c0_5, %c0_6] : memref<40x32xf32, #tpu.memory_space<vmem>>, vector<8x32xf32>
    %c8 = arith.constant 8 : index
    %c0_7 = arith.constant 0 : index
    %4 = vector.load %arg3[%c8, %c0_7] : memref<40x32xf32, #tpu.memory_space<vmem>>, vector<32x32xf32>
    %c0_8 = arith.constant 0 : index
    %c0_9 = arith.constant 0 : index
    %5 = vector.load %arg4[%c0_8, %c0_9] : memref<288x128xf32, #tpu.memory_space<vmem>>, vector<32x128xf32>
    %c32 = arith.constant 32 : index
    %c0_10 = arith.constant 0 : index
    %6 = vector.load %arg4[%c32, %c0_10] : memref<288x128xf32, #tpu.memory_space<vmem>>, vector<128x128xf32>
    %c160 = arith.constant 160 : index
    %c0_11 = arith.constant 0 : index
    %7 = vector.load %arg4[%c160, %c0_11] : memref<288x128xf32, #tpu.memory_space<vmem>>, vector<128x128xf32>
    %cst = arith.constant dense<0.000000e+00> : vector<128x8xf32>
    %8 = tpu.matmul %0, %1, %cst {dimension_numbers = #tpu.dot_dimension_numbers<[1], [0], [0], [1], [0, 0, 1, 1], [], []>} : vector<128x128xf32>, vector<128x8xf32>, vector<128x8xf32> -> vector<128x8xf32>
    %cst_12 = arith.constant dense<0.000000e+00> : vector<128x32xf32>
    %9 = tpu.matmul %8, %3, %cst_12 {dimension_numbers = #tpu.dot_dimension_numbers<[1], [0], [0], [1], [0, 0, 1, 1], [], []>} : vector<128x8xf32>, vector<8x32xf32>, vector<128x32xf32> -> vector<128x32xf32>
    %10 = vector.extract_strided_slice %2 {offsets = [0, 0], sizes = [1, 32], strides = [1, 1]} : vector<8x128xf32> to vector<1x32xf32>
    %11 = vector.broadcast %10 : vector<1x32xf32> to vector<128x32xf32>
    %12 = arith.addf %9, %11 : vector<128x32xf32>
    %cst_13 = arith.constant 0.000000e+00 : f32
    %13 = vector.broadcast %cst_13 : f32 to vector<128x32xf32>
    %14 = arith.maximumf %12, %13 : vector<128x32xf32>
    %cst_14 = arith.constant dense<0.000000e+00> : vector<128x32xf32>
    %15 = tpu.matmul %14, %4, %cst_14 {dimension_numbers = #tpu.dot_dimension_numbers<[1], [0], [0], [1], [0, 0, 1, 1], [], []>} : vector<128x32xf32>, vector<32x32xf32>, vector<128x32xf32> -> vector<128x32xf32>
    %cst_15 = arith.constant dense<0.000000e+00> : vector<128x32xf32>
    %16 = tpu.matmul %0, %15, %cst_15 {dimension_numbers = #tpu.dot_dimension_numbers<[1], [0], [0], [1], [0, 0, 1, 1], [], []>} : vector<128x128xf32>, vector<128x32xf32>, vector<128x32xf32> -> vector<128x32xf32>
    %17 = vector.extract_strided_slice %2 {offsets = [1, 0], sizes = [1, 32], strides = [1, 1]} : vector<8x128xf32> to vector<1x32xf32>
    %18 = vector.broadcast %17 : vector<1x32xf32> to vector<128x32xf32>
    %19 = arith.addf %16, %18 : vector<128x32xf32>
    %c0_16 = arith.constant 0 : index
    %c0_17 = arith.constant 0 : index
    %20 = vector.load %arg2[%c0_16, %c0_17] : memref<128x16xf32, #tpu.memory_space<vmem>>, vector<128x16xf32>
    %21 = vector.extract_strided_slice %20 {offsets = [0, 0], sizes = [128, 1], strides = [1, 1]} : vector<128x16xf32> to vector<128x1xf32>
    %22 = vector.broadcast %21 : vector<128x1xf32> to vector<128x32xf32>
    %23 = arith.addf %19, %22 : vector<128x32xf32>
    %cst_18 = arith.constant dense<0xFF800000> : vector<32xf32>
    %24 = vector.multi_reduction <maximumf>, %23, %cst_18 [0] : vector<128x32xf32> to vector<32xf32>
    %25 = vector.shape_cast %24 : vector<32xf32> to vector<1x32xf32>
    %c0_19 = arith.constant 0 : index
    %c0_20 = arith.constant 0 : index
    %26 = vector.load %arg7[%c0_19, %c0_20] : memref<16x32xf32, #tpu.memory_space<vmem>>, vector<1x32xf32>
    tpu.vector_store %arg7[%c0_19, %c0_20], %25 {strides = array<i32>} : memref<16x32xf32, #tpu.memory_space<vmem>>, vector<1x32xf32>,
    %27 = vector.extract_strided_slice %20 {offsets = [0, 1], sizes = [128, 1], strides = [1, 1]} : vector<128x16xf32> to vector<128x1xf32>
    %28 = vector.broadcast %27 : vector<128x1xf32> to vector<128x32xf32>
    %29 = arith.addf %19, %28 : vector<128x32xf32>
    %cst_21 = arith.constant dense<0xFF800000> : vector<32xf32>
    %30 = vector.multi_reduction <maximumf>, %29, %cst_21 [0] : vector<128x32xf32> to vector<32xf32>
    %31 = vector.shape_cast %30 : vector<32xf32> to vector<1x32xf32>
    %c1 = arith.constant 1 : index
    %c0_22 = arith.constant 0 : index
    %32 = vector.load %arg7[%c1, %c0_22] : memref<16x32xf32, #tpu.memory_space<vmem>>, vector<1x32xf32>
    tpu.vector_store %arg7[%c1, %c0_22], %31 {strides = array<i32>} : memref<16x32xf32, #tpu.memory_space<vmem>>, vector<1x32xf32>,
    %33 = vector.extract_strided_slice %20 {offsets = [0, 2], sizes = [128, 1], strides = [1, 1]} : vector<128x16xf32> to vector<128x1xf32>
    %34 = vector.broadcast %33 : vector<128x1xf32> to vector<128x32xf32>
    %35 = arith.addf %19, %34 : vector<128x32xf32>
    %cst_23 = arith.constant dense<0xFF800000> : vector<32xf32>
    %36 = vector.multi_reduction <maximumf>, %35, %cst_23 [0] : vector<128x32xf32> to vector<32xf32>
    %37 = vector.shape_cast %36 : vector<32xf32> to vector<1x32xf32>
    %c2 = arith.constant 2 : index
    %c0_24 = arith.constant 0 : index
    %38 = vector.load %arg7[%c2, %c0_24] : memref<16x32xf32, #tpu.memory_space<vmem>>, vector<1x32xf32>
    tpu.vector_store %arg7[%c2, %c0_24], %37 {strides = array<i32>} : memref<16x32xf32, #tpu.memory_space<vmem>>, vector<1x32xf32>,
    %39 = vector.extract_strided_slice %20 {offsets = [0, 3], sizes = [128, 1], strides = [1, 1]} : vector<128x16xf32> to vector<128x1xf32>
    %40 = vector.broadcast %39 : vector<128x1xf32> to vector<128x32xf32>
    %41 = arith.addf %19, %40 : vector<128x32xf32>
    %cst_25 = arith.constant dense<0xFF800000> : vector<32xf32>
    %42 = vector.multi_reduction <maximumf>, %41, %cst_25 [0] : vector<128x32xf32> to vector<32xf32>
    %43 = vector.shape_cast %42 : vector<32xf32> to vector<1x32xf32>
    %c3 = arith.constant 3 : index
    %c0_26 = arith.constant 0 : index
    %44 = vector.load %arg7[%c3, %c0_26] : memref<16x32xf32, #tpu.memory_space<vmem>>, vector<1x32xf32>
    tpu.vector_store %arg7[%c3, %c0_26], %43 {strides = array<i32>} : memref<16x32xf32, #tpu.memory_space<vmem>>, vector<1x32xf32>,
    %45 = vector.extract_strided_slice %20 {offsets = [0, 4], sizes = [128, 1], strides = [1, 1]} : vector<128x16xf32> to vector<128x1xf32>
    %46 = vector.broadcast %45 : vector<128x1xf32> to vector<128x32xf32>
    %47 = arith.addf %19, %46 : vector<128x32xf32>
    %cst_27 = arith.constant dense<0xFF800000> : vector<32xf32>
    %48 = vector.multi_reduction <maximumf>, %47, %cst_27 [0] : vector<128x32xf32> to vector<32xf32>
    %49 = vector.shape_cast %48 : vector<32xf32> to vector<1x32xf32>
    %c4 = arith.constant 4 : index
    %c0_28 = arith.constant 0 : index
    %50 = vector.load %arg7[%c4, %c0_28] : memref<16x32xf32, #tpu.memory_space<vmem>>, vector<1x32xf32>
    tpu.vector_store %arg7[%c4, %c0_28], %49 {strides = array<i32>} : memref<16x32xf32, #tpu.memory_space<vmem>>, vector<1x32xf32>,
    %51 = vector.extract_strided_slice %20 {offsets = [0, 5], sizes = [128, 1], strides = [1, 1]} : vector<128x16xf32> to vector<128x1xf32>
    %52 = vector.broadcast %51 : vector<128x1xf32> to vector<128x32xf32>
    %53 = arith.addf %19, %52 : vector<128x32xf32>
    %cst_29 = arith.constant dense<0xFF800000> : vector<32xf32>
    %54 = vector.multi_reduction <maximumf>, %53, %cst_29 [0] : vector<128x32xf32> to vector<32xf32>
    %55 = vector.shape_cast %54 : vector<32xf32> to vector<1x32xf32>
    %c5 = arith.constant 5 : index
    %c0_30 = arith.constant 0 : index
    %56 = vector.load %arg7[%c5, %c0_30] : memref<16x32xf32, #tpu.memory_space<vmem>>, vector<1x32xf32>
    tpu.vector_store %arg7[%c5, %c0_30], %55 {strides = array<i32>} : memref<16x32xf32, #tpu.memory_space<vmem>>, vector<1x32xf32>,
    %57 = vector.extract_strided_slice %20 {offsets = [0, 6], sizes = [128, 1], strides = [1, 1]} : vector<128x16xf32> to vector<128x1xf32>
    %58 = vector.broadcast %57 : vector<128x1xf32> to vector<128x32xf32>
    %59 = arith.addf %19, %58 : vector<128x32xf32>
    %cst_31 = arith.constant dense<0xFF800000> : vector<32xf32>
    %60 = vector.multi_reduction <maximumf>, %59, %cst_31 [0] : vector<128x32xf32> to vector<32xf32>
    %61 = vector.shape_cast %60 : vector<32xf32> to vector<1x32xf32>
    %c6 = arith.constant 6 : index
    %c0_32 = arith.constant 0 : index
    %62 = vector.load %arg7[%c6, %c0_32] : memref<16x32xf32, #tpu.memory_space<vmem>>, vector<1x32xf32>
    tpu.vector_store %arg7[%c6, %c0_32], %61 {strides = array<i32>} : memref<16x32xf32, #tpu.memory_space<vmem>>, vector<1x32xf32>,
    %63 = vector.extract_strided_slice %20 {offsets = [0, 7], sizes = [128, 1], strides = [1, 1]} : vector<128x16xf32> to vector<128x1xf32>
    %64 = vector.broadcast %63 : vector<128x1xf32> to vector<128x32xf32>
    %65 = arith.addf %19, %64 : vector<128x32xf32>
    %cst_33 = arith.constant dense<0xFF800000> : vector<32xf32>
    %66 = vector.multi_reduction <maximumf>, %65, %cst_33 [0] : vector<128x32xf32> to vector<32xf32>
    %67 = vector.shape_cast %66 : vector<32xf32> to vector<1x32xf32>
    %c7 = arith.constant 7 : index
    %c0_34 = arith.constant 0 : index
    %68 = vector.load %arg7[%c7, %c0_34] : memref<16x32xf32, #tpu.memory_space<vmem>>, vector<1x32xf32>
    tpu.vector_store %arg7[%c7, %c0_34], %67 {strides = array<i32>} : memref<16x32xf32, #tpu.memory_space<vmem>>, vector<1x32xf32>,
    %69 = vector.extract_strided_slice %20 {offsets = [0, 8], sizes = [128, 1], strides = [1, 1]} : vector<128x16xf32> to vector<128x1xf32>
    %70 = vector.broadcast %69 : vector<128x1xf32> to vector<128x32xf32>
    %71 = arith.addf %19, %70 : vector<128x32xf32>
    %cst_35 = arith.constant dense<0xFF800000> : vector<32xf32>
    %72 = vector.multi_reduction <maximumf>, %71, %cst_35 [0] : vector<128x32xf32> to vector<32xf32>
    %73 = vector.shape_cast %72 : vector<32xf32> to vector<1x32xf32>
    %c8_36 = arith.constant 8 : index
    %c0_37 = arith.constant 0 : index
    %74 = vector.load %arg7[%c8_36, %c0_37] : memref<16x32xf32, #tpu.memory_space<vmem>>, vector<1x32xf32>
    tpu.vector_store %arg7[%c8_36, %c0_37], %73 {strides = array<i32>} : memref<16x32xf32, #tpu.memory_space<vmem>>, vector<1x32xf32>,
    %75 = vector.extract_strided_slice %20 {offsets = [0, 9], sizes = [128, 1], strides = [1, 1]} : vector<128x16xf32> to vector<128x1xf32>
    %76 = vector.broadcast %75 : vector<128x1xf32> to vector<128x32xf32>
    %77 = arith.addf %19, %76 : vector<128x32xf32>
    %cst_38 = arith.constant dense<0xFF800000> : vector<32xf32>
    %78 = vector.multi_reduction <maximumf>, %77, %cst_38 [0] : vector<128x32xf32> to vector<32xf32>
    %79 = vector.shape_cast %78 : vector<32xf32> to vector<1x32xf32>
    %c9 = arith.constant 9 : index
    %c0_39 = arith.constant 0 : index
    %80 = vector.load %arg7[%c9, %c0_39] : memref<16x32xf32, #tpu.memory_space<vmem>>, vector<1x32xf32>
    tpu.vector_store %arg7[%c9, %c0_39], %79 {strides = array<i32>} : memref<16x32xf32, #tpu.memory_space<vmem>>, vector<1x32xf32>,
    %81 = vector.extract_strided_slice %20 {offsets = [0, 10], sizes = [128, 1], strides = [1, 1]} : vector<128x16xf32> to vector<128x1xf32>
    %82 = vector.broadcast %81 : vector<128x1xf32> to vector<128x32xf32>
    %83 = arith.addf %19, %82 : vector<128x32xf32>
    %cst_40 = arith.constant dense<0xFF800000> : vector<32xf32>
    %84 = vector.multi_reduction <maximumf>, %83, %cst_40 [0] : vector<128x32xf32> to vector<32xf32>
    %85 = vector.shape_cast %84 : vector<32xf32> to vector<1x32xf32>
    %c10 = arith.constant 10 : index
    %c0_41 = arith.constant 0 : index
    %86 = vector.load %arg7[%c10, %c0_41] : memref<16x32xf32, #tpu.memory_space<vmem>>, vector<1x32xf32>
    tpu.vector_store %arg7[%c10, %c0_41], %85 {strides = array<i32>} : memref<16x32xf32, #tpu.memory_space<vmem>>, vector<1x32xf32>,
    %87 = vector.extract_strided_slice %20 {offsets = [0, 11], sizes = [128, 1], strides = [1, 1]} : vector<128x16xf32> to vector<128x1xf32>
    %88 = vector.broadcast %87 : vector<128x1xf32> to vector<128x32xf32>
    %89 = arith.addf %19, %88 : vector<128x32xf32>
    %cst_42 = arith.constant dense<0xFF800000> : vector<32xf32>
    %90 = vector.multi_reduction <maximumf>, %89, %cst_42 [0] : vector<128x32xf32> to vector<32xf32>
    %91 = vector.shape_cast %90 : vector<32xf32> to vector<1x32xf32>
    %c11 = arith.constant 11 : index
    %c0_43 = arith.constant 0 : index
    %92 = vector.load %arg7[%c11, %c0_43] : memref<16x32xf32, #tpu.memory_space<vmem>>, vector<1x32xf32>
    tpu.vector_store %arg7[%c11, %c0_43], %91 {strides = array<i32>} : memref<16x32xf32, #tpu.memory_space<vmem>>, vector<1x32xf32>,
    %93 = vector.extract_strided_slice %20 {offsets = [0, 12], sizes = [128, 1], strides = [1, 1]} : vector<128x16xf32> to vector<128x1xf32>
    %94 = vector.broadcast %93 : vector<128x1xf32> to vector<128x32xf32>
    %95 = arith.addf %19, %94 : vector<128x32xf32>
    %cst_44 = arith.constant dense<0xFF800000> : vector<32xf32>
    %96 = vector.multi_reduction <maximumf>, %95, %cst_44 [0] : vector<128x32xf32> to vector<32xf32>
    %97 = vector.shape_cast %96 : vector<32xf32> to vector<1x32xf32>
    %c12 = arith.constant 12 : index
    %c0_45 = arith.constant 0 : index
    %98 = vector.load %arg7[%c12, %c0_45] : memref<16x32xf32, #tpu.memory_space<vmem>>, vector<1x32xf32>
    tpu.vector_store %arg7[%c12, %c0_45], %97 {strides = array<i32>} : memref<16x32xf32, #tpu.memory_space<vmem>>, vector<1x32xf32>,
    %99 = vector.extract_strided_slice %20 {offsets = [0, 13], sizes = [128, 1], strides = [1, 1]} : vector<128x16xf32> to vector<128x1xf32>
    %100 = vector.broadcast %99 : vector<128x1xf32> to vector<128x32xf32>
    %101 = arith.addf %19, %100 : vector<128x32xf32>
    %cst_46 = arith.constant dense<0xFF800000> : vector<32xf32>
    %102 = vector.multi_reduction <maximumf>, %101, %cst_46 [0] : vector<128x32xf32> to vector<32xf32>
    %103 = vector.shape_cast %102 : vector<32xf32> to vector<1x32xf32>
    %c13 = arith.constant 13 : index
    %c0_47 = arith.constant 0 : index
    %104 = vector.load %arg7[%c13, %c0_47] : memref<16x32xf32, #tpu.memory_space<vmem>>, vector<1x32xf32>
    tpu.vector_store %arg7[%c13, %c0_47], %103 {strides = array<i32>} : memref<16x32xf32, #tpu.memory_space<vmem>>, vector<1x32xf32>,
    %105 = vector.extract_strided_slice %20 {offsets = [0, 14], sizes = [128, 1], strides = [1, 1]} : vector<128x16xf32> to vector<128x1xf32>
    %106 = vector.broadcast %105 : vector<128x1xf32> to vector<128x32xf32>
    %107 = arith.addf %19, %106 : vector<128x32xf32>
    %cst_48 = arith.constant dense<0xFF800000> : vector<32xf32>
    %108 = vector.multi_reduction <maximumf>, %107, %cst_48 [0] : vector<128x32xf32> to vector<32xf32>
    %109 = vector.shape_cast %108 : vector<32xf32> to vector<1x32xf32>
    %c14 = arith.constant 14 : index
    %c0_49 = arith.constant 0 : index
    %110 = vector.load %arg7[%c14, %c0_49] : memref<16x32xf32, #tpu.memory_space<vmem>>, vector<1x32xf32>
    tpu.vector_store %arg7[%c14, %c0_49], %109 {strides = array<i32>} : memref<16x32xf32, #tpu.memory_space<vmem>>, vector<1x32xf32>,
    %111 = vector.extract_strided_slice %20 {offsets = [0, 15], sizes = [128, 1], strides = [1, 1]} : vector<128x16xf32> to vector<128x1xf32>
    %112 = vector.broadcast %111 : vector<128x1xf32> to vector<128x32xf32>
    %113 = arith.addf %19, %112 : vector<128x32xf32>
    %cst_50 = arith.constant dense<0xFF800000> : vector<32xf32>
    %114 = vector.multi_reduction <maximumf>, %113, %cst_50 [0] : vector<128x32xf32> to vector<32xf32>
    %115 = vector.shape_cast %114 : vector<32xf32> to vector<1x32xf32>
    %c15 = arith.constant 15 : index
    %c0_51 = arith.constant 0 : index
    %116 = vector.load %arg7[%c15, %c0_51] : memref<16x32xf32, #tpu.memory_space<vmem>>, vector<1x32xf32>
    tpu.vector_store %arg7[%c15, %c0_51], %115 {strides = array<i32>} : memref<16x32xf32, #tpu.memory_space<vmem>>, vector<1x32xf32>,
    %c0_52 = arith.constant 0 : index
    %c0_53 = arith.constant 0 : index
    %117 = vector.load %arg7[%c0_52, %c0_53] : memref<16x32xf32, #tpu.memory_space<vmem>>, vector<16x32xf32>
    %cst_54 = arith.constant dense<0.000000e+00> : vector<16x128xf32>
    %118 = tpu.matmul %117, %5, %cst_54 {dimension_numbers = #tpu.dot_dimension_numbers<[1], [0], [0], [1], [0, 0, 1, 1], [], []>} : vector<16x32xf32>, vector<32x128xf32>, vector<16x128xf32> -> vector<16x128xf32>
    %119 = vector.extract_strided_slice %2 {offsets = [2, 0], sizes = [1, 128], strides = [1, 1]} : vector<8x128xf32> to vector<1x128xf32>
    %120 = vector.broadcast %119 : vector<1x128xf32> to vector<16x128xf32>
    %121 = arith.addf %118, %120 : vector<16x128xf32>
    %cst_55 = arith.constant 0.000000e+00 : f32
    %122 = vector.broadcast %cst_55 : f32 to vector<16x128xf32>
    %123 = arith.maximumf %121, %122 : vector<16x128xf32>
    %cst_56 = arith.constant dense<0.000000e+00> : vector<16x128xf32>
    %124 = tpu.matmul %123, %6, %cst_56 {dimension_numbers = #tpu.dot_dimension_numbers<[1], [0], [0], [1], [0, 0, 1, 1], [], []>} : vector<16x128xf32>, vector<128x128xf32>, vector<16x128xf32> -> vector<16x128xf32>
    %125 = vector.extract_strided_slice %2 {offsets = [3, 0], sizes = [1, 128], strides = [1, 1]} : vector<8x128xf32> to vector<1x128xf32>
    %126 = vector.broadcast %125 : vector<1x128xf32> to vector<16x128xf32>
    %127 = arith.addf %124, %126 : vector<16x128xf32>
    %cst_57 = arith.constant 0.000000e+00 : f32
    %128 = vector.broadcast %cst_57 : f32 to vector<16x128xf32>
    %129 = arith.maximumf %127, %128 : vector<16x128xf32>
    %cst_58 = arith.constant dense<0.000000e+00> : vector<16x128xf32>
    %130 = tpu.matmul %129, %7, %cst_58 {dimension_numbers = #tpu.dot_dimension_numbers<[1], [0], [0], [1], [0, 0, 1, 1], [], []>} : vector<16x128xf32>, vector<128x128xf32>, vector<16x128xf32> -> vector<16x128xf32>
    %131 = vector.extract_strided_slice %2 {offsets = [4, 0], sizes = [1, 128], strides = [1, 1]} : vector<8x128xf32> to vector<1x128xf32>
    %132 = vector.broadcast %131 : vector<1x128xf32> to vector<16x128xf32>
    %133 = arith.addf %130, %132 : vector<16x128xf32>
    %cst_59 = arith.constant dense<0xFF800000> : vector<16xf32>
    %134 = vector.multi_reduction <maximumf>, %133, %cst_59 [1] : vector<16x128xf32> to vector<16xf32>
    %135 = vector.shape_cast %134 : vector<16xf32> to vector<16x1xf32>
    %136 = vector.broadcast %135 : vector<16x1xf32> to vector<16x128xf32>
    %137 = arith.subf %133, %136 : vector<16x128xf32>
    %138 = math.exp %137 : vector<16x128xf32>
    %cst_60 = arith.constant dense<0.000000e+00> : vector<16xf32>
    %139 = vector.multi_reduction <add>, %138, %cst_60 [1] : vector<16x128xf32> to vector<16xf32>
    %140 = vector.shape_cast %139 : vector<16xf32> to vector<16x1xf32>
    %141 = vector.broadcast %140 : vector<16x1xf32> to vector<16x128xf32>
    %142 = arith.divf %138, %141 : vector<16x128xf32>
    %c0_61 = arith.constant 0 : index
    %c0_62 = arith.constant 0 : index
    %143 = vector.load %arg6[%c0_61, %c0_62] : memref<16x128xf32, #tpu.memory_space<vmem>>, vector<16x128xf32>
    tpu.vector_store %arg6[%c0_61, %c0_62], %142 {strides = array<i32>} : memref<16x128xf32, #tpu.memory_space<vmem>>, vector<16x128xf32>,
    return
  }
}

</mosaic_0001>

<llo_original>
// kernel: gcn_forward_fused.1
$region0: #{gcn_forward_fused.1}
  #allocation0 [shape = 'u32[]', space=smem, size = 0x4, offset = 0x4, fixed_abs, tag = 'smem constant byte address 0x4 - core index']
  #allocation1 [shape = 'u32[144,128]{1,0:T(1,128)}', space=vmem, size = 0x12000, scoped, tag = 'internal scratch']
  #allocation2 [shape = 'f32[16,32]{1,0:T(8,128)}', space=vmem, size = 0x2000, scoped, tag = 'scratch operand']
  %s0 = inlined_call_operand.hbm [shape: f32[128,128], index: 0, kind: input, shape index: {}]
  %s1 = inlined_call_operand.vmem [shape: f32[128,8], index: 1, kind: input, shape index: {}]
  %s2 = inlined_call_operand.vmem [shape: f32[128,16], index: 2, kind: input, shape index: {}]
  %s3 = inlined_call_operand.vmem [shape: f32[40,32], index: 3, kind: input, shape index: {}]
  %s4 = inlined_call_operand.vmem [shape: f32[288,128], index: 4, kind: input, shape index: {}]
  %s5 = inlined_call_operand.vmem [shape: f32[8,128], index: 5, kind: input, shape index: {}]
  %s6 = inlined_call_operand.vmem [shape: f32[16,128], index: 6, kind: output, shape index: {}]
  %s7 = sld [smem:[#allocation0]]
  $region38: #{gcn_forward_fused.1} parent=0
    _
  %s9 = ssub.s32 1, %s7
  %s10 = scalar_select 0, %s9, %s7
  $region1: #{gcn_forward_fused.1} parent=0
    #allocation3 [shape = 'u8[65536]{0}', space=vmem, size = 0x10000, scoped, tag = 'input window, operand 0, single buffered']
    #allocation4 [shape = 's32[1]{0}', space=sflag, size = 0x4, scoped, tag = 'scoped memory for gcn_forward_fused.1']
    %11 = vsyncpa [#allocation4], 0
    // Predicated region
    $region2: #{gcn_forward_fused.1} parent=1 // pred_check
      _
    $region3: #{gcn_forward_fused.1} parent=1 // pred_check_branch
      %13 = sbr.rel (0) target = $region5
    $region4: #{gcn_forward_fused.1} parent=1 // pred_region
      %s15 = ssub.s32 2048, 2048
      %16 = vsyncadd [#allocation4], %s15
      %s17 = sshll.u32 [#allocation3], 4
      %s18 = int_to_ptr.vmem [resolvable:$true] %s17
      %23 = dma.hbm_to_vmem [thread:$0]  %s0, 2048, %s18, [#allocation4], 128, 128, 8
    $region5: #{gcn_forward_fused.1} parent=1 // pred_fallthru
      _
    // Predicated region
    $region6: #{gcn_forward_fused.1} parent=1 // pred_check
      _
    $region7: #{gcn_forward_fused.1} parent=1 // pred_check_branch
      %25 = sbr.rel (0) target = $region9
    $region8: #{gcn_forward_fused.1} parent=1 // pred_region
      _
    $region9: #{gcn_forward_fused.1} parent=1 // pred_fallthru
      _
    // Predicated region
    $region10: #{gcn_forward_fused.1} parent=1 // pred_check
      _
    $region11: #{gcn_forward_fused.1} parent=1 // pred_check_branch
      %27 = sbr.rel (0) target = $region13
    $region12: #{gcn_forward_fused.1} parent=1 // pred_region
      _
    $region13: #{gcn_forward_fused.1} parent=1 // pred_fallthru
      _
    // Predicated region
    $region14: #{gcn_forward_fused.1} parent=1 // pred_check
      _
    $region15: #{gcn_forward_fused.1} parent=1 // pred_check_branch
      %29 = sbr.rel (0) target = $region17
    $region16: #{gcn_forward_fused.1} parent=1 // pred_region
      _
    $region17: #{gcn_forward_fused.1} parent=1 // pred_fallthru
      _
    // Predicated region
    $region18: #{gcn_forward_fused.1} parent=1 // pred_check
      _
    $region19: #{gcn_forward_fused.1} parent=1 // pred_check_branch
      %31 = sbr.rel (0) target = $region21
    $region20: #{gcn_forward_fused.1} parent=1 // pred_region
      _
    $region21: #{gcn_forward_fused.1} parent=1 // pred_fallthru
      _
    // Predicated region
    $region22: #{gcn_forward_fused.1} parent=1 // pred_check
      _
    $region23: #{gcn_forward_fused.1} parent=1 // pred_check_branch
      %33 = sbr.rel (0) target = $region25
    $region24: #{gcn_forward_fused.1} parent=1 // pred_region
      _
    $region25: #{gcn_forward_fused.1} parent=1 // pred_fallthru
      _
    // Predicated region
    $region26: #{gcn_forward_fused.1} parent=1 // pred_check
      _
    $region27: #{gcn_forward_fused.1} parent=1 // pred_check_branch
      %35 = sbr.rel (0) target = $region29
    $region28: #{gcn_forward_fused.1} parent=1 // pred_region
      %36 = dma.done [#allocation4], 2048
    $region29: #{gcn_forward_fused.1} parent=1 // pred_fallthru
      _
    %v37 = vld [vmem:[#allocation3] sm:$0xff]
    %v38 = vld [vmem:[#allocation3 + $0x8] sm:$0xff]
    %v39 = vld [vmem:[#allocation3 + $0x10] sm:$0xff]
    %v40 = vld [vmem:[#allocation3 + $0x18] sm:$0xff]
    %v41 = vld [vmem:[#allocation3 + $0x20] sm:$0xff]
    %v42 = vld [vmem:[#allocation3 + $0x28] sm:$0xff]
    %v43 = vld [vmem:[#allocation3 + $0x30] sm:$0xff]
    %v44 = vld [vmem:[#allocation3 + $0x38] sm:$0xff]
    %v45 = vld [vmem:[#allocation3 + $0x40] sm:$0xff]
    %v46 = vld [vmem:[#allocation3 + $0x48] sm:$0xff]
    %v47 = vld [vmem:[#allocation3 + $0x50] sm:$0xff]
    %v48 = vld [vmem:[#allocation3 + $0x58] sm:$0xff]
    %v49 = vld [vmem:[#allocation3 + $0x60] sm:$0xff]
    %v50 = vld [vmem:[#allocation3 + $0x68] sm:$0xff]
    %v51 = vld [vmem:[#allocation3 + $0x70] sm:$0xff]
    %v52 = vld [vmem:[#allocation3 + $0x78] sm:$0xff]
    %v53 = vld [vmem:[%s1] sm:$0xff]
    %v54 = vld [vmem:[%s1 + $0x8] sm:$0xff]
    %v55 = vld [vmem:[%s1 + $0x10] sm:$0xff]
    %v56 = vld [vmem:[%s1 + $0x18] sm:$0xff]
    %v57 = vld [vmem:[%s1 + $0x20] sm:$0xff]
    %v58 = vld [vmem:[%s1 + $0x28] sm:$0xff]
    %v59 = vld [vmem:[%s1 + $0x30] sm:$0xff]
    %v60 = vld [vmem:[%s1 + $0x38] sm:$0xff]
    %v61 = vld [vmem:[%s1 + $0x40] sm:$0xff]
    %v62 = vld [vmem:[%s1 + $0x48] sm:$0xff]
    %v63 = vld [vmem:[%s1 + $0x50] sm:$0xff]
    %v64 = vld [vmem:[%s1 + $0x58] sm:$0xff]
    %v65 = vld [vmem:[%s1 + $0x60] sm:$0xff]
    %v66 = vld [vmem:[%s1 + $0x68] sm:$0xff]
    %v67 = vld [vmem:[%s1 + $0x70] sm:$0xff]
    %v68 = vld [vmem:[%s1 + $0x78] sm:$0xff]
    %v69 = vld [vmem:[%s5] sm:$0xff]
    %v70 = vld [vmem:[%s3] sm:$0xff]
    %v71 = vld [vmem:[%s3 + $0x8] sm:$0xff]
    %v72 = vld [vmem:[%s3 + $0x10] sm:$0xff]
    %v73 = vld [vmem:[%s3 + $0x18] sm:$0xff]
    %v74 = vld [vmem:[%s3 + $0x20] sm:$0xff]
    %v75 = vld [vmem:[%s4] sm:$0xff]
    %v76 = vld [vmem:[%s4 + $0x8] sm:$0xff]
    %v77 = vld [vmem:[%s4 + $0x10] sm:$0xff]
    %v78 = vld [vmem:[%s4 + $0x18] sm:$0xff]
    %v79 = vld [vmem:[%s4 + $0x20] sm:$0xff]
    %v80 = vld [vmem:[%s4 + $0x28] sm:$0xff]
    %v81 = vld [vmem:[%s4 + $0x30] sm:$0xff]
    %v82 = vld [vmem:[%s4 + $0x38] sm:$0xff]
    %v83 = vld [vmem:[%s4 + $0x40] sm:$0xff]
    %v84 = vld [vmem:[%s4 + $0x48] sm:$0xff]
    %v85 = vld [vmem:[%s4 + $0x50] sm:$0xff]
    %v86 = vld [vmem:[%s4 + $0x58] sm:$0xff]
    %v87 = vld [vmem:[%s4 + $0x60] sm:$0xff]
    %v88 = vld [vmem:[%s4 + $0x68] sm:$0xff]
    %v89 = vld [vmem:[%s4 + $0x70] sm:$0xff]
    %v90 = vld [vmem:[%s4 + $0x78] sm:$0xff]
    %v91 = vld [vmem:[%s4 + $0x80] sm:$0xff]
    %v92 = vld [vmem:[%s4 + $0x88] sm:$0xff]
    %v93 = vld [vmem:[%s4 + $0x90] sm:$0xff]
    %v94 = vld [vmem:[%s4 + $0x98] sm:$0xff]
    %v95 = vld [vmem:[%s4 + $0xa0] sm:$0xff]
    %v96 = vld [vmem:[%s4 + $0xa8] sm:$0xff]
    %v97 = vld [vmem:[%s4 + $0xb0] sm:$0xff]
    %v98 = vld [vmem:[%s4 + $0xb8] sm:$0xff]
    %v99 = vld [vmem:[%s4 + $0xc0] sm:$0xff]
    %v100 = vld [vmem:[%s4 + $0xc8] sm:$0xff]
    %v101 = vld [vmem:[%s4 + $0xd0] sm:$0xff]
    %v102 = vld [vmem:[%s4 + $0xd8] sm:$0xff]
    %v103 = vld [vmem:[%s4 + $0xe0] sm:$0xff]
    %v104 = vld [vmem:[%s4 + $0xe8] sm:$0xff]
    %v105 = vld [vmem:[%s4 + $0xf0] sm:$0xff]
    %v106 = vld [vmem:[%s4 + $0xf8] sm:$0xff]
    %v107 = vld [vmem:[%s4 + $0x100] sm:$0xff]
    %v108 = vld [vmem:[%s4 + $0x108] sm:$0xff]
    %v109 = vld [vmem:[%s4 + $0x110] sm:$0xff]
    %v110 = vld [vmem:[%s4 + $0x118] sm:$0xff]
    %111 = vmatprep.subr.mxu0 0.0
    %112 = vmatpush1.msra.mxu0 %v68
    %113 = vmatprep.subr.mxu0 0.0
    %114 = vmatpush1.msra.mxu0 %v67
    %115 = vmatprep.subr.mxu0 0.0
    %116 = vmatpush1.msra.mxu0 %v66
    %117 = vmatprep.subr.mxu0 0.0
    %118 = vmatpush1.msra.mxu0 %v65
    %119 = vmatprep.subr.mxu0 0.0
    %120 = vmatpush1.msra.mxu0 %v64
    %121 = vmatprep.subr.mxu0 0.0
    %122 = vmatpush1.msra.mxu0 %v63
    %123 = vmatprep.subr.mxu0 0.0
    %124 = vmatpush1.msra.mxu0 %v62
    %125 = vmatprep.subr.mxu0 0.0
    %126 = vmatpush1.msra.mxu0 %v61
    %127 = vmatprep.subr.mxu0 0.0
    %128 = vmatpush1.msra.mxu0 %v60
    %129 = vmatprep.subr.mxu0 0.0
    %130 = vmatpush1.msra.mxu0 %v59
    %131 = vmatprep.subr.mxu0 0.0
    %132 = vmatpush1.msra.mxu0 %v58
    %133 = vmatprep.subr.mxu0 0.0
    %134 = vmatpush1.msra.mxu0 %v57
    %135 = vmatprep.subr.mxu0 0.0
    %136 = vmatpush1.msra.mxu0 %v56
    %137 = vmatprep.subr.mxu0 0.0
    %138 = vmatpush1.msra.mxu0 %v55
    %139 = vmatprep.subr.mxu0 0.0
    %140 = vmatpush1.msra.mxu0 %v54
    %141 = vmatprep.subr.mxu0 0.0
    %142 = vmatpush1.msra.mxu0 %v53
    %143 = vmatprep.subr.mxu0 0.0
    %144 = vmatpush2.msra.mxu0 0.0
    %145 = vmatprep.subr.mxu0 0.0
    %146 = vmatpush2.msra.mxu0 0.0
    %147 = vmatprep.subr.mxu0 0.0
    %148 = vmatpush2.msra.mxu0 0.0
    %149 = vmatprep.subr.mxu0 0.0
    %150 = vmatpush2.msra.mxu0 0.0
    %151 = vmatprep.subr.mxu0 0.0
    %152 = vmatpush2.msra.mxu0 0.0
    %153 = vmatprep.subr.mxu0 0.0
    %154 = vmatpush2.msra.mxu0 0.0
    %155 = vmatprep.subr.mxu0 0.0
    %156 = vmatpush2.msra.mxu0 0.0
    %157 = vmatprep.subr.mxu0 0.0
    %158 = vmatpush2.msra.mxu0 0.0
    %159 = vmatprep.subr.mxu0 0.0
    %160 = vmatpush2.msra.mxu0 0.0
    %161 = vmatprep.subr.mxu0 0.0
    %162 = vmatpush2.msra.mxu0 0.0
    %163 = vmatprep.subr.mxu0 0.0
    %164 = vmatpush2.msra.mxu0 0.0
    %165 = vmatprep.subr.mxu0 0.0
    %166 = vmatpush2.msra.mxu0 0.0
    %167 = vmatprep.subr.mxu0 0.0
    %168 = vmatpush2.msra.mxu0 0.0
    %169 = vmatprep.subr.mxu0 0.0
    %170 = vmatpush2.msra.mxu0 0.0
    %171 = vmatprep.subr.mxu0 0.0
    %172 = vmatpush2.msra.mxu0 0.0
    %173 = vmatprep.subr.mxu0 0.0
    %174 = vmatpush2.msra.mxu0 0.0
    %175 = vmatprep.mubr.f32.mxu0 0.0
    %176 = vmatmul.mubr.f32.gmra.mxu0 %v37
    %v177 = vpop.f32.mrf.mxu0
    %v178 = vadd.f32 0.0, %v177
    %v179 = vpop.f32.mrf.mxu0
    %180 = vmatprep.mubr.f32.mxu0 0.0
    %181 = vmatmul.mubr.f32.gmra.mxu0 %v38
    %v182 = vpop.f32.mrf.mxu0
    %v183 = vadd.f32 0.0, %v182
    %v184 = vpop.f32.mrf.mxu0
    %185 = vmatprep.mubr.f32.mxu0 0.0
    %186 = vmatmul.mubr.f32.gmra.mxu0 %v39
    %v187 = vpop.f32.mrf.mxu0
    %v188 = vadd.f32 0.0, %v187
    %v189 = vpop.f32.mrf.mxu0
    %190 = vmatprep.mubr.f32.mxu0 0.0
    %191 = vmatmul.mubr.f32.gmra.mxu0 %v40
    %v192 = vpop.f32.mrf.mxu0
    %v193 = vadd.f32 0.0, %v192
    %v194 = vpop.f32.mrf.mxu0
    %195 = vmatprep.mubr.f32.mxu0 0.0
    %196 = vmatmul.mubr.f32.gmra.mxu0 %v41
    %v197 = vpop.f32.mrf.mxu0
    %v198 = vadd.f32 0.0, %v197
    %v199 = vpop.f32.mrf.mxu0
    %200 = vmatprep.mubr.f32.mxu0 0.0
    %201 = vmatmul.mubr.f32.gmra.mxu0 %v42
    %v202 = vpop.f32.mrf.mxu0
    %v203 = vadd.f32 0.0, %v202
    %v204 = vpop.f32.mrf.mxu0
    %205 = vmatprep.mubr.f32.mxu0 0.0
    %206 = vmatmul.mubr.f32.gmra.mxu0 %v43
    %v207 = vpop.f32.mrf.mxu0
    %v208 = vadd.f32 0.0, %v207
    %v209 = vpop.f32.mrf.mxu0
    %210 = vmatprep.mubr.f32.mxu0 0.0
    %211 = vmatmul.mubr.f32.gmra.mxu0 %v44
    %v212 = vpop.f32.mrf.mxu0
    %v213 = vadd.f32 0.0, %v212
    %v214 = vpop.f32.mrf.mxu0
    %215 = vmatprep.mubr.f32.mxu0 0.0
    %216 = vmatmul.mubr.f32.gmra.mxu0 %v45
    %v217 = vpop.f32.mrf.mxu0
    %v218 = vadd.f32 0.0, %v217
    %v219 = vpop.f32.mrf.mxu0
    %220 = vmatprep.mubr.f32.mxu0 0.0
    %221 = vmatmul.mubr.f32.gmra.mxu0 %v46
    %v222 = vpop.f32.mrf.mxu0
    %v223 = vadd.f32 0.0, %v222
    %v224 = vpop.f32.mrf.mxu0
    %225 = vmatprep.mubr.f32.mxu0 0.0
    %226 = vmatmul.mubr.f32.gmra.mxu0 %v47
    %v227 = vpop.f32.mrf.mxu0
    %v228 = vadd.f32 0.0, %v227
    %v229 = vpop.f32.mrf.mxu0
    %230 = vmatprep.mubr.f32.mxu0 0.0
    %231 = vmatmul.mubr.f32.gmra.mxu0 %v48
    %v232 = vpop.f32.mrf.mxu0
    %v233 = vadd.f32 0.0, %v232
    %v234 = vpop.f32.mrf.mxu0
    %235 = vmatprep.mubr.f32.mxu0 0.0
    %236 = vmatmul.mubr.f32.gmra.mxu0 %v49
    %v237 = vpop.f32.mrf.mxu0
    %v238 = vadd.f32 0.0, %v237
    %v239 = vpop.f32.mrf.mxu0
    %240 = vmatprep.mubr.f32.mxu0 0.0
    %241 = vmatmul.mubr.f32.gmra.mxu0 %v50
    %v242 = vpop.f32.mrf.mxu0
    %v243 = vadd.f32 0.0, %v242
    %v244 = vpop.f32.mrf.mxu0
    %245 = vmatprep.mubr.f32.mxu0 0.0
    %246 = vmatmul.mubr.f32.gmra.mxu0 %v51
    %v247 = vpop.f32.mrf.mxu0
    %v248 = vadd.f32 0.0, %v247
    %v249 = vpop.f32.mrf.mxu0
    %250 = vmatprep.mubr.f32.mxu0 0.0
    %251 = vmatmul.mubr.f32.gmra.mxu0 %v52
    %v252 = vpop.f32.mrf.mxu0
    %v253 = vadd.f32 0.0, %v252
    %v254 = vpop.f32.mrf.mxu0
    %255 = vdwg.mxu0
    %v256 = vlaneseq
    %v257 = vshrl.u32 %v256, 7
    %v258 = vsub.s32 0, %v257
    %v259 = vrot.slane %v69, %v258
    %vm260 = vcmask 64512
    %v262 = vsel %vm260, %v178, 0
    %v265 = vsel %vm260, %v183, 0
    %v268 = vsel %vm260, %v188, 0
    %v271 = vsel %vm260, %v193, 0
    %v274 = vsel %vm260, %v198, 0
    %v277 = vsel %vm260, %v203, 0
    %v280 = vsel %vm260, %v208, 0
    %v283 = vsel %vm260, %v213, 0
    %v286 = vsel %vm260, %v218, 0
    %v289 = vsel %vm260, %v223, 0
    %v292 = vsel %vm260, %v228, 0
    %v295 = vsel %vm260, %v233, 0
    %v298 = vsel %vm260, %v238, 0
    %v301 = vsel %vm260, %v243, 0
    %v304 = vsel %vm260, %v248, 0
    %v307 = vsel %vm260, %v253, 0
    %309 = vmatprep.subr.mxu0 0.0
    %310 = vmatpush1.msra.mxu0 0.0
    %311 = vmatprep.subr.mxu0 0.0
    %312 = vmatpush1.msra.mxu0 0.0
    %313 = vmatprep.subr.mxu0 0.0
    %314 = vmatpush1.msra.mxu0 0.0
    %315 = vmatprep.subr.mxu0 0.0
    %316 = vmatpush1.msra.mxu0 0.0
    %317 = vmatprep.subr.mxu0 0.0
    %318 = vmatpush1.msra.mxu0 0.0
    %319 = vmatprep.subr.mxu0 0.0
    %320 = vmatpush1.msra.mxu0 0.0
    %321 = vmatprep.subr.mxu0 0.0
    %322 = vmatpush1.msra.mxu0 0.0
    %323 = vmatprep.subr.mxu0 0.0
    %324 = vmatpush1.msra.mxu0 0.0
    %325 = vmatprep.subr.mxu0 0.0
    %326 = vmatpush1.msra.mxu0 0.0
    %327 = vmatprep.subr.mxu0 0.0
    %328 = vmatpush1.msra.mxu0 0.0
    %329 = vmatprep.subr.mxu0 0.0
    %330 = vmatpush1.msra.mxu0 0.0
    %331 = vmatprep.subr.mxu0 0.0
    %332 = vmatpush1.msra.mxu0 0.0
    %333 = vmatprep.subr.mxu0 0.0
    %334 = vmatpush1.msra.mxu0 0.0
    %335 = vmatprep.subr.mxu0 0.0
    %336 = vmatpush1.msra.mxu0 0.0
    %337 = vmatprep.subr.mxu0 0.0
    %338 = vmatpush1.msra.mxu0 0.0
    %339 = vmatprep.subr.mxu0 0.0
    %340 = vmatpush1.msra.mxu0 %v70
    %341 = vmatprep.subr.mxu0 0.0
    %342 = vmatpush2.msra.mxu0 0.0
    %343 = vmatprep.subr.mxu0 0.0
    %344 = vmatpush2.msra.mxu0 0.0
    %345 = vmatprep.subr.mxu0 0.0
    %346 = vmatpush2.msra.mxu0 0.0
    %347 = vmatprep.subr.mxu0 0.0
    %348 = vmatpush2.msra.mxu0 0.0
    %349 = vmatprep.subr.mxu0 0.0
    %350 = vmatpush2.msra.mxu0 0.0
    %351 = vmatprep.subr.mxu0 0.0
    %352 = vmatpush2.msra.mxu0 0.0
    %353 = vmatprep.subr.mxu0 0.0
    %354 = vmatpush2.msra.mxu0 0.0
    %355 = vmatprep.subr.mxu0 0.0
    %356 = vmatpush2.msra.mxu0 0.0
    %357 = vmatprep.subr.mxu0 0.0
    %358 = vmatpush2.msra.mxu0 0.0
    %359 = vmatprep.subr.mxu0 0.0
    %360 = vmatpush2.msra.mxu0 0.0
    %361 = vmatprep.subr.mxu0 0.0
    %362 = vmatpush2.msra.mxu0 0.0
    %363 = vmatprep.subr.mxu0 0.0
    %364 = vmatpush2.msra.mxu0 0.0
    %365 = vmatprep.subr.mxu0 0.0
    %366 = vmatpush2.msra.mxu0 0.0
    %367 = vmatprep.subr.mxu0 0.0
    %368 = vmatpush2.msra.mxu0 0.0
    %369 = vmatprep.subr.mxu0 0.0
    %370 = vmatpush2.msra.mxu0 0.0
    %371 = vmatprep.subr.mxu0 0.0
    %372 = vmatpush2.msra.mxu0 0.0
    %373 = vmatprep.mubr.f32.mxu0 0.0
    %374 = vmatmul.mubr.f32.gmra.mxu0 %v262
    %v375 = vpop.f32.mrf.mxu0
    %v376 = vadd.f32 %v259, %v375
    %v377 = vpop.f32.mrf.mxu0
    %378 = vmatprep.mubr.f32.mxu0 0.0
    %379 = vmatmul.mubr.f32.gmra.mxu0 %v265
    %v380 = vpop.f32.mrf.mxu0
    %v381 = vadd.f32 %v259, %v380
    %v382 = vpop.f32.mrf.mxu0
    %383 = vmatprep.mubr.f32.mxu0 0.0
    %384 = vmatmul.mubr.f32.gmra.mxu0 %v268
    %v385 = vpop.f32.mrf.mxu0
    %v386 = vadd.f32 %v259, %v385
    %v387 = vpop.f32.mrf.mxu0
    %388 = vmatprep.mubr.f32.mxu0 0.0
    %389 = vmatmul.mubr.f32.gmra.mxu0 %v271
    %v390 = vpop.f32.mrf.mxu0
    %v391 = vadd.f32 %v259, %v390
    %v392 = vpop.f32.mrf.mxu0
    %393 = vmatprep.mubr.f32.mxu0 0.0
    %394 = vmatmul.mubr.f32.gmra.mxu0 %v274
    %v395 = vpop.f32.mrf.mxu0
    %v396 = vadd.f32 %v259, %v395
    %v397 = vpop.f32.mrf.mxu0
    %398 = vmatprep.mubr.f32.mxu0 0.0
    %399 = vmatmul.mubr.f32.gmra.mxu0 %v277
    %v400 = vpop.f32.mrf.mxu0
    %v401 = vadd.f32 %v259, %v400
    %v402 = vpop.f32.mrf.mxu0
    %403 = vmatprep.mubr.f32.mxu0 0.0
    %404 = vmatmul.mubr.f32.gmra.mxu0 %v280
    %v405 = vpop.f32.mrf.mxu0
    %v406 = vadd.f32 %v259, %v405
    %v407 = vpop.f32.mrf.mxu0
    %408 = vmatprep.mubr.f32.mxu0 0.0
    %409 = vmatmul.mubr.f32.gmra.mxu0 %v283
    %v410 = vpop.f32.mrf.mxu0
    %v411 = vadd.f32 %v259, %v410
    %v412 = vpop.f32.mrf.mxu0
    %413 = vmatprep.mubr.f32.mxu0 0.0
    %414 = vmatmul.mubr.f32.gmra.mxu0 %v286
    %v415 = vpop.f32.mrf.mxu0
    %v416 = vadd.f32 %v259, %v415
    %v417 = vpop.f32.mrf.mxu0
    %418 = vmatprep.mubr.f32.mxu0 0.0
    %419 = vmatmul.mubr.f32.gmra.mxu0 %v289
    %v420 = vpop.f32.mrf.mxu0
    %v421 = vadd.f32 %v259, %v420
    %v422 = vpop.f32.mrf.mxu0
    %423 = vmatprep.mubr.f32.mxu0 0.0
    %424 = vmatmul.mubr.f32.gmra.mxu0 %v292
    %v425 = vpop.f32.mrf.mxu0
    %v426 = vadd.f32 %v259, %v425
    %v427 = vpop.f32.mrf.mxu0
    %428 = vmatprep.mubr.f32.mxu0 0.0
    %429 = vmatmul.mubr.f32.gmra.mxu0 %v295
    %v430 = vpop.f32.mrf.mxu0
    %v431 = vadd.f32 %v259, %v430
    %v432 = vpop.f32.mrf.mxu0
    %433 = vmatprep.mubr.f32.mxu0 0.0
    %434 = vmatmul.mubr.f32.gmra.mxu0 %v298
    %v435 = vpop.f32.mrf.mxu0
    %v436 = vadd.f32 %v259, %v435
    %v437 = vpop.f32.mrf.mxu0
    %438 = vmatprep.mubr.f32.mxu0 0.0
    %439 = vmatmul.mubr.f32.gmra.mxu0 %v301
    %v440 = vpop.f32.mrf.mxu0
    %v441 = vadd.f32 %v259, %v440
    %v442 = vpop.f32.mrf.mxu0
    %443 = vmatprep.mubr.f32.mxu0 0.0
    %444 = vmatmul.mubr.f32.gmra.mxu0 %v304
    %v445 = vpop.f32.mrf.mxu0
    %v446 = vadd.f32 %v259, %v445
    %v447 = vpop.f32.mrf.mxu0
    %448 = vmatprep.mubr.f32.mxu0 0.0
    %449 = vmatmul.mubr.f32.gmra.mxu0 %v307
    %v450 = vpop.f32.mrf.mxu0
    %v451 = vadd.f32 %v259, %v450
    %v452 = vpop.f32.mrf.mxu0
    %453 = vdwg.mxu0
    %v454 = vmax.f32 %v376, 0.0
    %v455 = vmax.f32 %v381, 0.0
    %v456 = vmax.f32 %v386, 0.0
    %v457 = vmax.f32 %v391, 0.0
    %v458 = vmax.f32 %v396, 0.0
    %v459 = vmax.f32 %v401, 0.0
    %v460 = vmax.f32 %v406, 0.0
    %v461 = vmax.f32 %v411, 0.0
    %v462 = vmax.f32 %v416, 0.0
    %v463 = vmax.f32 %v421, 0.0
    %v464 = vmax.f32 %v426, 0.0
    %v465 = vmax.f32 %v431, 0.0
    %v466 = vmax.f32 %v436, 0.0
    %v467 = vmax.f32 %v441, 0.0
    %v468 = vmax.f32 %v446, 0.0
    %v469 = vmax.f32 %v451, 0.0
    %vm470 = vcmask 261120
    %v472 = vsel %vm470, %v454, 0
    %v475 = vsel %vm470, %v455, 0
    %v478 = vsel %vm470, %v456, 0
    %v481 = vsel %vm470, %v457, 0
    %v484 = vsel %vm470, %v458, 0
    %v487 = vsel %vm470, %v459, 0
    %v490 = vsel %vm470, %v460, 0
    %v493 = vsel %vm470, %v461, 0
    %v496 = vsel %vm470, %v462, 0
    %v499 = vsel %vm470, %v463, 0
    %v502 = vsel %vm470, %v464, 0
    %v505 = vsel %vm470, %v465, 0
    %v508 = vsel %vm470, %v466, 0
    %v511 = vsel %vm470, %v467, 0
    %v514 = vsel %vm470, %v468, 0
    %v517 = vsel %vm470, %v469, 0
    %519 = vmatprep.subr.mxu0 0.0
    %520 = vmatpush1.msra.mxu0 0.0
    %521 = vmatprep.subr.mxu0 0.0
    %522 = vmatpush1.msra.mxu0 0.0
    %523 = vmatprep.subr.mxu0 0.0
    %524 = vmatpush1.msra.mxu0 0.0
    %525 = vmatprep.subr.mxu0 0.0
    %526 = vmatpush1.msra.mxu0 0.0
    %527 = vmatprep.subr.mxu0 0.0
    %528 = vmatpush1.msra.mxu0 0.0
    %529 = vmatprep.subr.mxu0 0.0
    %530 = vmatpush1.msra.mxu0 0.0
    %531 = vmatprep.subr.mxu0 0.0
    %532 = vmatpush1.msra.mxu0 0.0
    %533 = vmatprep.subr.mxu0 0.0
    %534 = vmatpush1.msra.mxu0 0.0
    %535 = vmatprep.subr.mxu0 0.0
    %536 = vmatpush1.msra.mxu0 0.0
    %537 = vmatprep.subr.mxu0 0.0
    %538 = vmatpush1.msra.mxu0 0.0
    %539 = vmatprep.subr.mxu0 0.0
    %540 = vmatpush1.msra.mxu0 0.0
    %541 = vmatprep.subr.mxu0 0.0
    %542 = vmatpush1.msra.mxu0 0.0
    %543 = vmatprep.subr.mxu0 0.0
    %544 = vmatpush1.msra.mxu0 %v74
    %545 = vmatprep.subr.mxu0 0.0
    %546 = vmatpush1.msra.mxu0 %v73
    %547 = vmatprep.subr.mxu0 0.0
    %548 = vmatpush1.msra.mxu0 %v72
    %549 = vmatprep.subr.mxu0 0.0
    %550 = vmatpush1.msra.mxu0 %v71
    %551 = vmatprep.subr.mxu0 0.0
    %552 = vmatpush2.msra.mxu0 0.0
    %553 = vmatprep.subr.mxu0 0.0
    %554 = vmatpush2.msra.mxu0 0.0
    %555 = vmatprep.subr.mxu0 0.0
    %556 = vmatpush2.msra.mxu0 0.0
    %557 = vmatprep.subr.mxu0 0.0
    %558 = vmatpush2.msra.mxu0 0.0
    %559 = vmatprep.subr.mxu0 0.0
    %560 = vmatpush2.msra.mxu0 0.0
    %561 = vmatprep.subr.mxu0 0.0
    %562 = vmatpush2.msra.mxu0 0.0
    %563 = vmatprep.subr.mxu0 0.0
    %564 = vmatpush2.msra.mxu0 0.0
    %565 = vmatprep.subr.mxu0 0.0
    %566 = vmatpush2.msra.mxu0 0.0
    %567 = vmatprep.subr.mxu0 0.0
    %568 = vmatpush2.msra.mxu0 0.0
    %569 = vmatprep.subr.mxu0 0.0
    %570 = vmatpush2.msra.mxu0 0.0
    %571 = vmatprep.subr.mxu0 0.0
    %572 = vmatpush2.msra.mxu0 0.0
    %573 = vmatprep.subr.mxu0 0.0
    %574 = vmatpush2.msra.mxu0 0.0
    %575 = vmatprep.subr.mxu0 0.0
    %576 = vmatpush2.msra.mxu0 0.0
    %577 = vmatprep.subr.mxu0 0.0
    %578 = vmatpush2.msra.mxu0 0.0
    %579 = vmatprep.subr.mxu0 0.0
    %580 = vmatpush2.msra.mxu0 0.0
    %581 = vmatprep.subr.mxu0 0.0
    %582 = vmatpush2.msra.mxu0 0.0
    %583 = vmatprep.mubr.f32.mxu0 0.0
    %584 = vmatmul.mubr.f32.gmra.mxu0 %v472
    %v585 = vpop.f32.mrf.mxu0
    %v586 = vadd.f32 0.0, %v585
    %v587 = vpop.f32.mrf.mxu0
    %588 = vmatprep.mubr.f32.mxu0 0.0
    %589 = vmatmul.mubr.f32.gmra.mxu0 %v475
    %v590 = vpop.f32.mrf.mxu0
    %v591 = vadd.f32 0.0, %v590
    %v592 = vpop.f32.mrf.mxu0
    %593 = vmatprep.mubr.f32.mxu0 0.0
    %594 = vmatmul.mubr.f32.gmra.mxu0 %v478
    %v595 = vpop.f32.mrf.mxu0
    %v596 = vadd.f32 0.0, %v595
    %v597 = vpop.f32.mrf.mxu0
    %598 = vmatprep.mubr.f32.mxu0 0.0
    %599 = vmatmul.mubr.f32.gmra.mxu0 %v481
    %v600 = vpop.f32.mrf.mxu0
    %v601 = vadd.f32 0.0, %v600
    %v602 = vpop.f32.mrf.mxu0
    %603 = vmatprep.mubr.f32.mxu0 0.0
    %604 = vmatmul.mubr.f32.gmra.mxu0 %v484
    %v605 = vpop.f32.mrf.mxu0
    %v606 = vadd.f32 0.0, %v605
    %v607 = vpop.f32.mrf.mxu0
    %608 = vmatprep.mubr.f32.mxu0 0.0
    %609 = vmatmul.mubr.f32.gmra.mxu0 %v487
    %v610 = vpop.f32.mrf.mxu0
    %v611 = vadd.f32 0.0, %v610
    %v612 = vpop.f32.mrf.mxu0
    %613 = vmatprep.mubr.f32.mxu0 0.0
    %614 = vmatmul.mubr.f32.gmra.mxu0 %v490
    %v615 = vpop.f32.mrf.mxu0
    %v616 = vadd.f32 0.0, %v615
    %v617 = vpop.f32.mrf.mxu0
    %618 = vmatprep.mubr.f32.mxu0 0.0
    %619 = vmatmul.mubr.f32.gmra.mxu0 %v493
    %v620 = vpop.f32.mrf.mxu0
    %v621 = vadd.f32 0.0, %v620
    %v622 = vpop.f32.mrf.mxu0
    %623 = vmatprep.mubr.f32.mxu0 0.0
    %624 = vmatmul.mubr.f32.gmra.mxu0 %v496
    %v625 = vpop.f32.mrf.mxu0
    %v626 = vadd.f32 0.0, %v625
    %v627 = vpop.f32.mrf.mxu0
    %628 = vmatprep.mubr.f32.mxu0 0.0
    %629 = vmatmul.mubr.f32.gmra.mxu0 %v499
    %v630 = vpop.f32.mrf.mxu0
    %v631 = vadd.f32 0.0, %v630
    %v632 = vpop.f32.mrf.mxu0
    %633 = vmatprep.mubr.f32.mxu0 0.0
    %634 = vmatmul.mubr.f32.gmra.mxu0 %v502
    %v635 = vpop.f32.mrf.mxu0
    %v636 = vadd.f32 0.0, %v635
    %v637 = vpop.f32.mrf.mxu0
    %638 = vmatprep.mubr.f32.mxu0 0.0
    %639 = vmatmul.mubr.f32.gmra.mxu0 %v505
    %v640 = vpop.f32.mrf.mxu0
    %v641 = vadd.f32 0.0, %v640
    %v642 = vpop.f32.mrf.mxu0
    %643 = vmatprep.mubr.f32.mxu0 0.0
    %644 = vmatmul.mubr.f32.gmra.mxu0 %v508
    %v645 = vpop.f32.mrf.mxu0
    %v646 = vadd.f32 0.0, %v645
    %v647 = vpop.f32.mrf.mxu0
    %648 = vmatprep.mubr.f32.mxu0 0.0
    %649 = vmatmul.mubr.f32.gmra.mxu0 %v511
    %v650 = vpop.f32.mrf.mxu0
    %v651 = vadd.f32 0.0, %v650
    %v652 = vpop.f32.mrf.mxu0
    %653 = vmatprep.mubr.f32.mxu0 0.0
    %654 = vmatmul.mubr.f32.gmra.mxu0 %v514
    %v655 = vpop.f32.mrf.mxu0
    %v656 = vadd.f32 0.0, %v655
    %v657 = vpop.f32.mrf.mxu0
    %658 = vmatprep.mubr.f32.mxu0 0.0
    %659 = vmatmul.mubr.f32.gmra.mxu0 %v517
    %v660 = vpop.f32.mrf.mxu0
    %v661 = vadd.f32 0.0, %v660
    %v662 = vpop.f32.mrf.mxu0
    %663 = vdwg.mxu0
    %v664 = vlaneseq
    %v665 = vshrl.u32 %v664, 7
    %v666 = vsub.s32 1, %v665
    %v667 = vrot.slane %v69, %v666
    %668 = vmatprep.subr.mxu0 0.0
    %669 = vmatpush1.msra.mxu0 %v661
    %670 = vmatprep.subr.mxu0 0.0
    %671 = vmatpush1.msra.mxu0 %v656
    %672 = vmatprep.subr.mxu0 0.0
    %673 = vmatpush1.msra.mxu0 %v651
    %674 = vmatprep.subr.mxu0 0.0
    %675 = vmatpush1.msra.mxu0 %v646
    %676 = vmatprep.subr.mxu0 0.0
    %677 = vmatpush1.msra.mxu0 %v641
    %678 = vmatprep.subr.mxu0 0.0
    %679 = vmatpush1.msra.mxu0 %v636
    %680 = vmatprep.subr.mxu0 0.0
    %681 = vmatpush1.msra.mxu0 %v631
    %682 = vmatprep.subr.mxu0 0.0
    %683 = vmatpush1.msra.mxu0 %v626
    %684 = vmatprep.subr.mxu0 0.0
    %685 = vmatpush1.msra.mxu0 %v621
    %686 = vmatprep.subr.mxu0 0.0
    %687 = vmatpush1.msra.mxu0 %v616
    %688 = vmatprep.subr.mxu0 0.0
    %689 = vmatpush1.msra.mxu0 %v611
    %690 = vmatprep.subr.mxu0 0.0
    %691 = vmatpush1.msra.mxu0 %v606
    %692 = vmatprep.subr.mxu0 0.0
    %693 = vmatpush1.msra.mxu0 %v601
    %694 = vmatprep.subr.mxu0 0.0
    %695 = vmatpush1.msra.mxu0 %v596
    %696 = vmatprep.subr.mxu0 0.0
    %697 = vmatpush1.msra.mxu0 %v591
    %698 = vmatprep.subr.mxu0 0.0
    %699 = vmatpush1.msra.mxu0 %v586
    %700 = vmatprep.subr.mxu0 0.0
    %701 = vmatpush2.msra.mxu0 0.0
    %702 = vmatprep.subr.mxu0 0.0
    %703 = vmatpush2.msra.mxu0 0.0
    %704 = vmatprep.subr.mxu0 0.0
    %705 = vmatpush2.msra.mxu0 0.0
    %706 = vmatprep.subr.mxu0 0.0
    %707 = vmatpush2.msra.mxu0 0.0
    %708 = vmatprep.subr.mxu0 0.0
    %709 = vmatpush2.msra.mxu0 0.0
    %710 = vmatprep.subr.mxu0 0.0
    %711 = vmatpush2.msra.mxu0 0.0
    %712 = vmatprep.subr.mxu0 0.0
    %713 = vmatpush2.msra.mxu0 0.0
    %714 = vmatprep.subr.mxu0 0.0
    %715 = vmatpush2.msra.mxu0 0.0
    %716 = vmatprep.subr.mxu0 0.0
    %717 = vmatpush2.msra.mxu0 0.0
    %718 = vmatprep.subr.mxu0 0.0
    %719 = vmatpush2.msra.mxu0 0.0
    %720 = vmatprep.subr.mxu0 0.0
    %721 = vmatpush2.msra.mxu0 0.0
    %722 = vmatprep.subr.mxu0 0.0
    %723 = vmatpush2.msra.mxu0 0.0
    %724 = vmatprep.subr.mxu0 0.0
    %725 = vmatpush2.msra.mxu0 0.0
    %726 = vmatprep.subr.mxu0 0.0
    %727 = vmatpush2.msra.mxu0 0.0
    %728 = vmatprep.subr.mxu0 0.0
    %729 = vmatpush2.msra.mxu0 0.0
    %730 = vmatprep.subr.mxu0 0.0
    %731 = vmatpush2.msra.mxu0 0.0
    %732 = vmatprep.mubr.f32.mxu0 0.0
    %733 = vmatmul.mubr.f32.gmra.mxu0 %v37
    %v734 = vpop.f32.mrf.mxu0
    %v735 = vadd.f32 %v667, %v734
    %v736 = vpop.f32.mrf.mxu0
    %737 = vmatprep.mubr.f32.mxu0 0.0
    %738 = vmatmul.mubr.f32.gmra.mxu0 %v38
    %v739 = vpop.f32.mrf.mxu0
    %v740 = vadd.f32 %v667, %v739
    %v741 = vpop.f32.mrf.mxu0
    %742 = vmatprep.mubr.f32.mxu0 0.0
    %743 = vmatmul.mubr.f32.gmra.mxu0 %v39
    %v744 = vpop.f32.mrf.mxu0
    %v745 = vadd.f32 %v667, %v744
    %v746 = vpop.f32.mrf.mxu0
    %747 = vmatprep.mubr.f32.mxu0 0.0
    %748 = vmatmul.mubr.f32.gmra.mxu0 %v40
    %v749 = vpop.f32.mrf.mxu0
    %v750 = vadd.f32 %v667, %v749
    %v751 = vpop.f32.mrf.mxu0
    %752 = vmatprep.mubr.f32.mxu0 0.0
    %753 = vmatmul.mubr.f32.gmra.mxu0 %v41
    %v754 = vpop.f32.mrf.mxu0
    %v755 = vadd.f32 %v667, %v754
    %v756 = vpop.f32.mrf.mxu0
    %757 = vmatprep.mubr.f32.mxu0 0.0
    %758 = vmatmul.mubr.f32.gmra.mxu0 %v42
    %v759 = vpop.f32.mrf.mxu0
    %v760 = vadd.f32 %v667, %v759
    %v761 = vpop.f32.mrf.mxu0
    %762 = vmatprep.mubr.f32.mxu0 0.0
    %763 = vmatmul.mubr.f32.gmra.mxu0 %v43
    %v764 = vpop.f32.mrf.mxu0
    %v765 = vadd.f32 %v667, %v764
    %v766 = vpop.f32.mrf.mxu0
    %767 = vmatprep.mubr.f32.mxu0 0.0
    %768 = vmatmul.mubr.f32.gmra.mxu0 %v44
    %v769 = vpop.f32.mrf.mxu0
    %v770 = vadd.f32 %v667, %v769
    %v771 = vpop.f32.mrf.mxu0
    %772 = vmatprep.mubr.f32.mxu0 0.0
    %773 = vmatmul.mubr.f32.gmra.mxu0 %v45
    %v774 = vpop.f32.mrf.mxu0
    %v775 = vadd.f32 %v667, %v774
    %v776 = vpop.f32.mrf.mxu0
    %777 = vmatprep.mubr.f32.mxu0 0.0
    %778 = vmatmul.mubr.f32.gmra.mxu0 %v46
    %v779 = vpop.f32.mrf.mxu0
    %v780 = vadd.f32 %v667, %v779
    %v781 = vpop.f32.mrf.mxu0
    %782 = vmatprep.mubr.f32.mxu0 0.0
    %783 = vmatmul.mubr.f32.gmra.mxu0 %v47
    %v784 = vpop.f32.mrf.mxu0
    %v785 = vadd.f32 %v667, %v784
    %v786 = vpop.f32.mrf.mxu0
    %787 = vmatprep.mubr.f32.mxu0 0.0
    %788 = vmatmul.mubr.f32.gmra.mxu0 %v48
    %v789 = vpop.f32.mrf.mxu0
    %v790 = vadd.f32 %v667, %v789
    %v791 = vpop.f32.mrf.mxu0
    %792 = vmatprep.mubr.f32.mxu0 0.0
    %793 = vmatmul.mubr.f32.gmra.mxu0 %v49
    %v794 = vpop.f32.mrf.mxu0
    %v795 = vadd.f32 %v667, %v794
    %v796 = vpop.f32.mrf.mxu0
    %797 = vmatprep.mubr.f32.mxu0 0.0
    %798 = vmatmul.mubr.f32.gmra.mxu0 %v50
    %v799 = vpop.f32.mrf.mxu0
    %v800 = vadd.f32 %v667, %v799
    %v801 = vpop.f32.mrf.mxu0
    %802 = vmatprep.mubr.f32.mxu0 0.0
    %803 = vmatmul.mubr.f32.gmra.mxu0 %v51
    %v804 = vpop.f32.mrf.mxu0
    %v805 = vadd.f32 %v667, %v804
    %v806 = vpop.f32.mrf.mxu0
    %807 = vmatprep.mubr.f32.mxu0 0.0
    %808 = vmatmul.mubr.f32.gmra.mxu0 %v52
    %v809 = vpop.f32.mrf.mxu0
    %v810 = vadd.f32 %v667, %v809
    %v811 = vpop.f32.mrf.mxu0
    %812 = vdwg.mxu0
    %v813 = vld [vmem:[%s2] sm:$0xff]
    %v814 = vld [vmem:[%s2 + $0x8] sm:$0xff]
    %v815 = vld [vmem:[%s2 + $0x10] sm:$0xff]
    %v816 = vld [vmem:[%s2 + $0x18] sm:$0xff]
    %v817 = vld [vmem:[%s2 + $0x20] sm:$0xff]
    %v818 = vld [vmem:[%s2 + $0x28] sm:$0xff]
    %v819 = vld [vmem:[%s2 + $0x30] sm:$0xff]
    %v820 = vld [vmem:[%s2 + $0x38] sm:$0xff]
    %v821 = vld [vmem:[%s2 + $0x40] sm:$0xff]
    %v822 = vld [vmem:[%s2 + $0x48] sm:$0xff]
    %v823 = vld [vmem:[%s2 + $0x50] sm:$0xff]
    %v824 = vld [vmem:[%s2 + $0x58] sm:$0xff]
    %v825 = vld [vmem:[%s2 + $0x60] sm:$0xff]
    %v826 = vld [vmem:[%s2 + $0x68] sm:$0xff]
    %v827 = vld [vmem:[%s2 + $0x70] sm:$0xff]
    %v828 = vld [vmem:[%s2 + $0x78] sm:$0xff]
    %830 = vset.pattern.permute.xlu0 0
    %831 = vperm.xlu0 %830, %v813
    %v832 = vpop.permute.xlu0 %831
    %835 = vset.pattern.permute.xlu0 0
    %836 = vperm.xlu0 %835, %v814
    %v837 = vpop.permute.xlu0 %836
    %840 = vset.pattern.permute.xlu0 0
    %841 = vperm.xlu0 %840, %v815
    %v842 = vpop.permute.xlu0 %841
    %845 = vset.pattern.permute.xlu0 0
    %846 = vperm.xlu0 %845, %v816
    %v847 = vpop.permute.xlu0 %846
    %850 = vset.pattern.permute.xlu0 0
    %851 = vperm.xlu0 %850, %v817
    %v852 = vpop.permute.xlu0 %851
    %855 = vset.pattern.permute.xlu0 0
    %856 = vperm.xlu0 %855, %v818
    %v857 = vpop.permute.xlu0 %856
    %860 = vset.pattern.permute.xlu0 0
    %861 = vperm.xlu0 %860, %v819
    %v862 = vpop.permute.xlu0 %861
    %865 = vset.pattern.permute.xlu0 0
    %866 = vperm.xlu0 %865, %v820
    %v867 = vpop.permute.xlu0 %866
    %870 = vset.pattern.permute.xlu0 0
    %871 = vperm.xlu0 %870, %v821
    %v872 = vpop.permute.xlu0 %871
    %875 = vset.pattern.permute.xlu0 0
    %876 = vperm.xlu0 %875, %v822
    %v877 = vpop.permute.xlu0 %876
    %880 = vset.pattern.permute.xlu0 0
    %881 = vperm.xlu0 %880, %v823
    %v882 = vpop.permute.xlu0 %881
    %885 = vset.pattern.permute.xlu0 0
    %886 = vperm.xlu0 %885, %v824
    %v887 = vpop.permute.xlu0 %886
    %890 = vset.pattern.permute.xlu0 0
    %891 = vperm.xlu0 %890, %v825
    %v892 = vpop.permute.xlu0 %891
    %895 = vset.pattern.permute.xlu0 0
    %896 = vperm.xlu0 %895, %v826
    %v897 = vpop.permute.xlu0 %896
    %900 = vset.pattern.permute.xlu0 0
    %901 = vperm.xlu0 %900, %v827
    %v902 = vpop.permute.xlu0 %901
    %905 = vset.pattern.permute.xlu0 0
    %906 = vperm.xlu0 %905, %v828
    %v907 = vpop.permute.xlu0 %906
    %v909 = vadd.f32 %v735, %v832
    %v910 = vadd.f32 %v740, %v837
    %v911 = vadd.f32 %v745, %v842
    %v912 = vadd.f32 %v750, %v847
    %v913 = vadd.f32 %v755, %v852
    %v914 = vadd.f32 %v760, %v857
    %v915 = vadd.f32 %v765, %v862
    %v916 = vadd.f32 %v770, %v867
    %v917 = vadd.f32 %v775, %v872
    %v918 = vadd.f32 %v780, %v877
    %v919 = vadd.f32 %v785, %v882
    %v920 = vadd.f32 %v790, %v887
    %v921 = vadd.f32 %v795, %v892
    %v922 = vadd.f32 %v800, %v897
    %v923 = vadd.f32 %v805, %v902
    %v924 = vadd.f32 %v810, %v907
    %v925 = vsel %vm470, %v909, -inf
    %v926 = vsel %vm470, %v910, -inf
    %v927 = vsel %vm470, %v911, -inf
    %v928 = vsel %vm470, %v912, -inf
    %v929 = vsel %vm470, %v913, -inf
    %v930 = vmax.f32 %v925, %v929
    %v931 = vsel %vm470, %v914, -inf
    %v932 = vmax.f32 %v926, %v931
    %v933 = vsel %vm470, %v915, -inf
    %v934 = vmax.f32 %v927, %v933
    %v935 = vsel %vm470, %v916, -inf
    %v936 = vmax.f32 %v928, %v935
    %v937 = vsel %vm470, %v917, -inf
    %v938 = vmax.f32 %v930, %v937
    %v939 = vsel %vm470, %v918, -inf
    %v940 = vmax.f32 %v932, %v939
    %v941 = vsel %vm470, %v919, -inf
    %v942 = vmax.f32 %v934, %v941
    %v943 = vsel %vm470, %v920, -inf
    %v944 = vmax.f32 %v936, %v943
    %v945 = vsel %vm470, %v921, -inf
    %v946 = vmax.f32 %v938, %v945
    %v947 = vsel %vm470, %v922, -inf
    %v948 = vmax.f32 %v940, %v947
    %v949 = vsel %vm470, %v923, -inf
    %v950 = vmax.f32 %v942, %v949
    %v951 = vsel %vm470, %v924, -inf
    %v952 = vmax.f32 %v944, %v951
    %v953 = vmax.f32 %v946, %v948
    %v954 = vmax.f32 %v950, %v952
    %v955 = vmax.f32 %v953, %v954
    %v956 = vrot.slane %v955, 4
    %v957 = vmax.f32 %v955, %v956
    %v958 = vrot.slane %v957, 2
    %v959 = vmax.f32 %v957, %v958
    %v960 = vrot.slane %v959, 1
    %v961 = vmax.f32 %v959, %v960
    %vm962 = vcmask 253952
    %963 = vst.msk [vmem:[#allocation2] sm:$0x1] %vm962, %v961
    %964 = vset.pattern.permute.xlu0 1
    %965 = vperm.xlu0 %964, %v813
    %v966 = vpop.permute.xlu0 %965
    %968 = vset.pattern.permute.xlu0 1
    %969 = vperm.xlu0 %968, %v814
    %v970 = vpop.permute.xlu0 %969
    %972 = vset.pattern.permute.xlu0 1
    %973 = vperm.xlu0 %972, %v815
    %v974 = vpop.permute.xlu0 %973
    %976 = vset.pattern.permute.xlu0 1
    %977 = vperm.xlu0 %976, %v816
    %v978 = vpop.permute.xlu0 %977
    %980 = vset.pattern.permute.xlu0 1
    %981 = vperm.xlu0 %980, %v817
    %v982 = vpop.permute.xlu0 %981
    %984 = vset.pattern.permute.xlu0 1
    %985 = vperm.xlu0 %984, %v818
    %v986 = vpop.permute.xlu0 %985
    %988 = vset.pattern.permute.xlu0 1
    %989 = vperm.xlu0 %988, %v819
    %v990 = vpop.permute.xlu0 %989
    %992 = vset.pattern.permute.xlu0 1
    %993 = vperm.xlu0 %992, %v820
    %v994 = vpop.permute.xlu0 %993
    %996 = vset.pattern.permute.xlu0 1
    %997 = vperm.xlu0 %996, %v821
    %v998 = vpop.permute.xlu0 %997
    %1000 = vset.pattern.permute.xlu0 1
    %1001 = vperm.xlu0 %1000, %v822
    %v1002 = vpop.permute.xlu0 %1001
    %1004 = vset.pattern.permute.xlu0 1
    %1005 = vperm.xlu0 %1004, %v823
    %v1006 = vpop.permute.xlu0 %1005
    %1008 = vset.pattern.permute.xlu0 1
    %1009 = vperm.xlu0 %1008, %v824
    %v1010 = vpop.permute.xlu0 %1009
    %1012 = vset.pattern.permute.xlu0 1
    %1013 = vperm.xlu0 %1012, %v825
    %v1014 = vpop.permute.xlu0 %1013
    %1016 = vset.pattern.permute.xlu0 1
    %1017 = vperm.xlu0 %1016, %v826
    %v1018 = vpop.permute.xlu0 %1017
    %1020 = vset.pattern.permute.xlu0 1
    %1021 = vperm.xlu0 %1020, %v827
    %v1022 = vpop.permute.xlu0 %1021
    %1024 = vset.pattern.permute.xlu0 1
    %1025 = vperm.xlu0 %1024, %v828
    %v1026 = vpop.permute.xlu0 %1025
    %v1028 = vadd.f32 %v735, %v966
    %v1029 = vadd.f32 %v740, %v970
    %v1030 = vadd.f32 %v745, %v974
    %v1031 = vadd.f32 %v750, %v978
    %v1032 = vadd.f32 %v755, %v982
    %v1033 = vadd.f32 %v760, %v986
    %v1034 = vadd.f32 %v765, %v990
    %v1035 = vadd.f32 %v770, %v994
    %v1036 = vadd.f32 %v775, %v998
    %v1037 = vadd.f32 %v780, %v1002
    %v1038 = vadd.f32 %v785, %v1006
    %v1039 = vadd.f32 %v790, %v1010
    %v1040 = vadd.f32 %v795, %v1014
    %v1041 = vadd.f32 %v800, %v1018
    %v1042 = vadd.f32 %v805, %v1022
    %v1043 = vadd.f32 %v810, %v1026
    %v1044 = vsel %vm470, %v1028, -inf
    %v1045 = vsel %vm470, %v1029, -inf
    %v1046 = vsel %vm470, %v1030, -inf
    %v1047 = vsel %vm470, %v1031, -inf
    %v1048 = vsel %vm470, %v1032, -inf
    %v1049 = vmax.f32 %v1044, %v1048
    %v1050 = vsel %vm470, %v1033, -inf
    %v1051 = vmax.f32 %v1045, %v1050
    %v1052 = vsel %vm470, %v1034, -inf
    %v1053 = vmax.f32 %v1046, %v1052
    %v1054 = vsel %vm470, %v1035, -inf
    %v1055 = vmax.f32 %v1047, %v1054
    %v1056 = vsel %vm470, %v1036, -inf
    %v1057 = vmax.f32 %v1049, %v1056
    %v1058 = vsel %vm470, %v1037, -inf
    %v1059 = vmax.f32 %v1051, %v1058
    %v1060 = vsel %vm470, %v1038, -inf
    %v1061 = vmax.f32 %v1053, %v1060
    %v1062 = vsel %vm470, %v1039, -inf
    %v1063 = vmax.f32 %v1055, %v1062
    %v1064 = vsel %vm470, %v1040, -inf
    %v1065 = vmax.f32 %v1057, %v1064
    %v1066 = vsel %vm470, %v1041, -inf
    %v1067 = vmax.f32 %v1059, %v1066
    %v1068 = vsel %vm470, %v1042, -inf
    %v1069 = vmax.f32 %v1061, %v1068
    %v1070 = vsel %vm470, %v1043, -inf
    %v1071 = vmax.f32 %v1063, %v1070
    %v1072 = vmax.f32 %v1065, %v1067
    %v1073 = vmax.f32 %v1069, %v1071
    %v1074 = vmax.f32 %v1072, %v1073
    %v1075 = vrot.slane %v1074, 4
    %v1076 = vmax.f32 %v1074, %v1075
    %v1077 = vrot.slane %v1076, 2
    %v1078 = vmax.f32 %v1076, %v1077
    %v1079 = vrot.slane %v1078, 1
    %v1080 = vmax.f32 %v1078, %v1079
    %1081 = vst.msk [vmem:[#allocation2 + $0x1] sm:$0x1] %vm962, %v1080
    %1082 = vset.pattern.permute.xlu0 2
    %1083 = vperm.xlu0 %1082, %v813
    %v1084 = vpop.permute.xlu0 %1083
    %1086 = vset.pattern.permute.xlu0 2
    %1087 = vperm.xlu0 %1086, %v814
    %v1088 = vpop.permute.xlu0 %1087
    %1090 = vset.pattern.permute.xlu0 2
    %1091 = vperm.xlu0 %1090, %v815
    %v1092 = vpop.permute.xlu0 %1091
    %1094 = vset.pattern.permute.xlu0 2
    %1095 = vperm.xlu0 %1094, %v816
    %v1096 = vpop.permute.xlu0 %1095
    %1098 = vset.pattern.permute.xlu0 2
    %1099 = vperm.xlu0 %1098, %v817
    %v1100 = vpop.permute.xlu0 %1099
    %1102 = vset.pattern.permute.xlu0 2
    %1103 = vperm.xlu0 %1102, %v818
    %v1104 = vpop.permute.xlu0 %1103
    %1106 = vset.pattern.permute.xlu0 2
    %1107 = vperm.xlu0 %1106, %v819
    %v1108 = vpop.permute.xlu0 %1107
    %1110 = vset.pattern.permute.xlu0 2
    %1111 = vperm.xlu0 %1110, %v820
    %v1112 = vpop.permute.xlu0 %1111
    %1114 = vset.pattern.permute.xlu0 2
    %1115 = vperm.xlu0 %1114, %v821
    %v1116 = vpop.permute.xlu0 %1115
    %1118 = vset.pattern.permute.xlu0 2
    %1119 = vperm.xlu0 %1118, %v822
    %v1120 = vpop.permute.xlu0 %1119
    %1122 = vset.pattern.permute.xlu0 2
    %1123 = vperm.xlu0 %1122, %v823
    %v1124 = vpop.permute.xlu0 %1123
    %1126 = vset.pattern.permute.xlu0 2
    %1127 = vperm.xlu0 %1126, %v824
    %v1128 = vpop.permute.xlu0 %1127
    %1130 = vset.pattern.permute.xlu0 2
    %1131 = vperm.xlu0 %1130, %v825
    %v1132 = vpop.permute.xlu0 %1131
    %1134 = vset.pattern.permute.xlu0 2
    %1135 = vperm.xlu0 %1134, %v826
    %v1136 = vpop.permute.xlu0 %1135
    %1138 = vset.pattern.permute.xlu0 2
    %1139 = vperm.xlu0 %1138, %v827
    %v1140 = vpop.permute.xlu0 %1139
    %1142 = vset.pattern.permute.xlu0 2
    %1143 = vperm.xlu0 %1142, %v828
    %v1144 = vpop.permute.xlu0 %1143
    %v1146 = vadd.f32 %v735, %v1084
    %v1147 = vadd.f32 %v740, %v1088
    %v1148 = vadd.f32 %v745, %v1092
    %v1149 = vadd.f32 %v750, %v1096
    %v1150 = vadd.f32 %v755, %v1100
    %v1151 = vadd.f32 %v760, %v1104
    %v1152 = vadd.f32 %v765, %v1108
    %v1153 = vadd.f32 %v770, %v1112
    %v1154 = vadd.f32 %v775, %v1116
    %v1155 = vadd.f32 %v780, %v1120
    %v1156 = vadd.f32 %v785, %v1124
    %v1157 = vadd.f32 %v790, %v1128
    %v1158 = vadd.f32 %v795, %v1132
    %v1159 = vadd.f32 %v800, %v1136
    %v1160 = vadd.f32 %v805, %v1140
    %v1161 = vadd.f32 %v810, %v1144
    %v1162 = vsel %vm470, %v1146, -inf
    %v1163 = vsel %vm470, %v1147, -inf
    %v1164 = vsel %vm470, %v1148, -inf
    %v1165 = vsel %vm470, %v1149, -inf
    %v1166 = vsel %vm470, %v1150, -inf
    %v1167 = vmax.f32 %v1162, %v1166
    %v1168 = vsel %vm470, %v1151, -inf
    %v1169 = vmax.f32 %v1163, %v1168
    %v1170 = vsel %vm470, %v1152, -inf
    %v1171 = vmax.f32 %v1164, %v1170
    %v1172 = vsel %vm470, %v1153, -inf
    %v1173 = vmax.f32 %v1165, %v1172
    %v1174 = vsel %vm470, %v1154, -inf
    %v1175 = vmax.f32 %v1167, %v1174
    %v1176 = vsel %vm470, %v1155, -inf
    %v1177 = vmax.f32 %v1169, %v1176
    %v1178 = vsel %vm470, %v1156, -inf
    %v1179 = vmax.f32 %v1171, %v1178
    %v1180 = vsel %vm470, %v1157, -inf
    %v1181 = vmax.f32 %v1173, %v1180
    %v1182 = vsel %vm470, %v1158, -inf
    %v1183 = vmax.f32 %v1175, %v1182
    %v1184 = vsel %vm470, %v1159, -inf
    %v1185 = vmax.f32 %v1177, %v1184
    %v1186 = vsel %vm470, %v1160, -inf
    %v1187 = vmax.f32 %v1179, %v1186
    %v1188 = vsel %vm470, %v1161, -inf
    %v1189 = vmax.f32 %v1181, %v1188
    %v1190 = vmax.f32 %v1183, %v1185
    %v1191 = vmax.f32 %v1187, %v1189
    %v1192 = vmax.f32 %v1190, %v1191
    %v1193 = vrot.slane %v1192, 4
    %v1194 = vmax.f32 %v1192, %v1193
    %v1195 = vrot.slane %v1194, 2
    %v1196 = vmax.f32 %v1194, %v1195
    %v1197 = vrot.slane %v1196, 1
    %v1198 = vmax.f32 %v1196, %v1197
    %1199 = vst.msk [vmem:[#allocation2 + $0x2] sm:$0x1] %vm962, %v1198
    %1200 = vset.pattern.permute.xlu0 3
    %1201 = vperm.xlu0 %1200, %v813
    %v1202 = vpop.permute.xlu0 %1201
    %1204 = vset.pattern.permute.xlu0 3
    %1205 = vperm.xlu0 %1204, %v814
    %v1206 = vpop.permute.xlu0 %1205
    %1208 = vset.pattern.permute.xlu0 3
    %1209 = vperm.xlu0 %1208, %v815
    %v1210 = vpop.permute.xlu0 %1209
    %1212 = vset.pattern.permute.xlu0 3
    %1213 = vperm.xlu0 %1212, %v816
    %v1214 = vpop.permute.xlu0 %1213
    %1216 = vset.pattern.permute.xlu0 3
    %1217 = vperm.xlu0 %1216, %v817
    %v1218 = vpop.permute.xlu0 %1217
    %1220 = vset.pattern.permute.xlu0 3
    %1221 = vperm.xlu0 %1220, %v818
    %v1222 = vpop.permute.xlu0 %1221
    %1224 = vset.pattern.permute.xlu0 3
    %1225 = vperm.xlu0 %1224, %v819
    %v1226 = vpop.permute.xlu0 %1225
    %1228 = vset.pattern.permute.xlu0 3
    %1229 = vperm.xlu0 %1228, %v820
    %v1230 = vpop.permute.xlu0 %1229
    %1232 = vset.pattern.permute.xlu0 3
    %1233 = vperm.xlu0 %1232, %v821
    %v1234 = vpop.permute.xlu0 %1233
    %1236 = vset.pattern.permute.xlu0 3
    %1237 = vperm.xlu0 %1236, %v822
    %v1238 = vpop.permute.xlu0 %1237
    %1240 = vset.pattern.permute.xlu0 3
    %1241 = vperm.xlu0 %1240, %v823
    %v1242 = vpop.permute.xlu0 %1241
    %1244 = vset.pattern.permute.xlu0 3
    %1245 = vperm.xlu0 %1244, %v824
    %v1246 = vpop.permute.xlu0 %1245
    %1248 = vset.pattern.permute.xlu0 3
    %1249 = vperm.xlu0 %1248, %v825
    %v1250 = vpop.permute.xlu0 %1249
    %1252 = vset.pattern.permute.xlu0 3
    %1253 = vperm.xlu0 %1252, %v826
    %v1254 = vpop.permute.xlu0 %1253
    %1256 = vset.pattern.permute.xlu0 3
    %1257 = vperm.xlu0 %1256, %v827
    %v1258 = vpop.permute.xlu0 %1257
    %1260 = vset.pattern.permute.xlu0 3
    %1261 = vperm.xlu0 %1260, %v828
    %v1262 = vpop.permute.xlu0 %1261
    %v1264 = vadd.f32 %v735, %v1202
    %v1265 = vadd.f32 %v740, %v1206
    %v1266 = vadd.f32 %v745, %v1210
    %v1267 = vadd.f32 %v750, %v1214
    %v1268 = vadd.f32 %v755, %v1218
    %v1269 = vadd.f32 %v760, %v1222
    %v1270 = vadd.f32 %v765, %v1226
    %v1271 = vadd.f32 %v770, %v1230
    %v1272 = vadd.f32 %v775, %v1234
    %v1273 = vadd.f32 %v780, %v1238
    %v1274 = vadd.f32 %v785, %v1242
    %v1275 = vadd.f32 %v790, %v1246
    %v1276 = vadd.f32 %v795, %v1250
    %v1277 = vadd.f32 %v800, %v1254
    %v1278 = vadd.f32 %v805, %v1258
    %v1279 = vadd.f32 %v810, %v1262
    %v1280 = vsel %vm470, %v1264, -inf
    %v1281 = vsel %vm470, %v1265, -inf
    %v1282 = vsel %vm470, %v1266, -inf
    %v1283 = vsel %vm470, %v1267, -inf
    %v1284 = vsel %vm470, %v1268, -inf
    %v1285 = vmax.f32 %v1280, %v1284
    %v1286 = vsel %vm470, %v1269, -inf
    %v1287 = vmax.f32 %v1281, %v1286
    %v1288 = vsel %vm470, %v1270, -inf
    %v1289 = vmax.f32 %v1282, %v1288
    %v1290 = vsel %vm470, %v1271, -inf
    %v1291 = vmax.f32 %v1283, %v1290
    %v1292 = vsel %vm470, %v1272, -inf
    %v1293 = vmax.f32 %v1285, %v1292
    %v1294 = vsel %vm470, %v1273, -inf
    %v1295 = vmax.f32 %v1287, %v1294
    %v1296 = vsel %vm470, %v1274, -inf
    %v1297 = vmax.f32 %v1289, %v1296
    %v1298 = vsel %vm470, %v1275, -inf
    %v1299 = vmax.f32 %v1291, %v1298
    %v1300 = vsel %vm470, %v1276, -inf
    %v1301 = vmax.f32 %v1293, %v1300
    %v1302 = vsel %vm470, %v1277, -inf
    %v1303 = vmax.f32 %v1295, %v1302
    %v1304 = vsel %vm470, %v1278, -inf
    %v1305 = vmax.f32 %v1297, %v1304
    %v1306 = vsel %vm470, %v1279, -inf
    %v1307 = vmax.f32 %v1299, %v1306
    %v1308 = vmax.f32 %v1301, %v1303
    %v1309 = vmax.f32 %v1305, %v1307
    %v1310 = vmax.f32 %v1308, %v1309
    %v1311 = vrot.slane %v1310, 4
    %v1312 = vmax.f32 %v1310, %v1311
    %v1313 = vrot.slane %v1312, 2
    %v1314 = vmax.f32 %v1312, %v1313
    %v1315 = vrot.slane %v1314, 1
    %v1316 = vmax.f32 %v1314, %v1315
    %1317 = vst.msk [vmem:[#allocation2 + $0x3] sm:$0x1] %vm962, %v1316
    %1318 = vset.pattern.permute.xlu0 4
    %1319 = vperm.xlu0 %1318, %v813
    %v1320 = vpop.permute.xlu0 %1319
    %1322 = vset.pattern.permute.xlu0 4
    %1323 = vperm.xlu0 %1322, %v814
    %v1324 = vpop.permute.xlu0 %1323
    %1326 = vset.pattern.permute.xlu0 4
    %1327 = vperm.xlu0 %1326, %v815
    %v1328 = vpop.permute.xlu0 %1327
    %1330 = vset.pattern.permute.xlu0 4
    %1331 = vperm.xlu0 %1330, %v816
    %v1332 = vpop.permute.xlu0 %1331
    %1334 = vset.pattern.permute.xlu0 4
    %1335 = vperm.xlu0 %1334, %v817
    %v1336 = vpop.permute.xlu0 %1335
    %1338 = vset.pattern.permute.xlu0 4
    %1339 = vperm.xlu0 %1338, %v818
    %v1340 = vpop.permute.xlu0 %1339
    %1342 = vset.pattern.permute.xlu0 4
    %1343 = vperm.xlu0 %1342, %v819
    %v1344 = vpop.permute.xlu0 %1343
    %1346 = vset.pattern.permute.xlu0 4
    %1347 = vperm.xlu0 %1346, %v820
    %v1348 = vpop.permute.xlu0 %1347
    %1350 = vset.pattern.permute.xlu0 4
    %1351 = vperm.xlu0 %1350, %v821
    %v1352 = vpop.permute.xlu0 %1351
    %1354 = vset.pattern.permute.xlu0 4
    %1355 = vperm.xlu0 %1354, %v822
    %v1356 = vpop.permute.xlu0 %1355
    %1358 = vset.pattern.permute.xlu0 4
    %1359 = vperm.xlu0 %1358, %v823
    %v1360 = vpop.permute.xlu0 %1359
    %1362 = vset.pattern.permute.xlu0 4
    %1363 = vperm.xlu0 %1362, %v824
    %v1364 = vpop.permute.xlu0 %1363
    %1366 = vset.pattern.permute.xlu0 4
    %1367 = vperm.xlu0 %1366, %v825
    %v1368 = vpop.permute.xlu0 %1367
    %1370 = vset.pattern.permute.xlu0 4
    %1371 = vperm.xlu0 %1370, %v826
    %v1372 = vpop.permute.xlu0 %1371
    %1374 = vset.pattern.permute.xlu0 4
    %1375 = vperm.xlu0 %1374, %v827
    %v1376 = vpop.permute.xlu0 %1375
    %1378 = vset.pattern.permute.xlu0 4
    %1379 = vperm.xlu0 %1378, %v828
    %v1380 = vpop.permute.xlu0 %1379
    %v1382 = vadd.f32 %v735, %v1320
    %v1383 = vadd.f32 %v740, %v1324
    %v1384 = vadd.f32 %v745, %v1328
    %v1385 = vadd.f32 %v750, %v1332
    %v1386 = vadd.f32 %v755, %v1336
    %v1387 = vadd.f32 %v760, %v1340
    %v1388 = vadd.f32 %v765, %v1344
    %v1389 = vadd.f32 %v770, %v1348
    %v1390 = vadd.f32 %v775, %v1352
    %v1391 = vadd.f32 %v780, %v1356
    %v1392 = vadd.f32 %v785, %v1360
    %v1393 = vadd.f32 %v790, %v1364
    %v1394 = vadd.f32 %v795, %v1368
    %v1395 = vadd.f32 %v800, %v1372
    %v1396 = vadd.f32 %v805, %v1376
    %v1397 = vadd.f32 %v810, %v1380
    %v1398 = vsel %vm470, %v1382, -inf
    %v1399 = vsel %vm470, %v1383, -inf
    %v1400 = vsel %vm470, %v1384, -inf
    %v1401 = vsel %vm470, %v1385, -inf
    %v1402 = vsel %vm470, %v1386, -inf
    %v1403 = vmax.f32 %v1398, %v1402
    %v1404 = vsel %vm470, %v1387, -inf
    %v1405 = vmax.f32 %v1399, %v1404
    %v1406 = vsel %vm470, %v1388, -inf
    %v1407 = vmax.f32 %v1400, %v1406
    %v1408 = vsel %vm470, %v1389, -inf
    %v1409 = vmax.f32 %v1401, %v1408
    %v1410 = vsel %vm470, %v1390, -inf
    %v1411 = vmax.f32 %v1403, %v1410
    %v1412 = vsel %vm470, %v1391, -inf
    %v1413 = vmax.f32 %v1405, %v1412
    %v1414 = vsel %vm470, %v1392, -inf
    %v1415 = vmax.f32 %v1407, %v1414
    %v1416 = vsel %vm470, %v1393, -inf
    %v1417 = vmax.f32 %v1409, %v1416
    %v1418 = vsel %vm470, %v1394, -inf
    %v1419 = vmax.f32 %v1411, %v1418
    %v1420 = vsel %vm470, %v1395, -inf
    %v1421 = vmax.f32 %v1413, %v1420
    %v1422 = vsel %vm470, %v1396, -inf
    %v1423 = vmax.f32 %v1415, %v1422
    %v1424 = vsel %vm470, %v1397, -inf
    %v1425 = vmax.f32 %v1417, %v1424
    %v1426 = vmax.f32 %v1419, %v1421
    %v1427 = vmax.f32 %v1423, %v1425
    %v1428 = vmax.f32 %v1426, %v1427
    %v1429 = vrot.slane %v1428, 4
    %v1430 = vmax.f32 %v1428, %v1429
    %v1431 = vrot.slane %v1430, 2
    %v1432 = vmax.f32 %v1430, %v1431
    %v1433 = vrot.slane %v1432, 1
    %v1434 = vmax.f32 %v1432, %v1433
    %1435 = vst.msk [vmem:[#allocation2 + $0x4] sm:$0x1] %vm962, %v1434
    %1436 = vset.pattern.permute.xlu0 5
    %1437 = vperm.xlu0 %1436, %v813
    %v1438 = vpop.permute.xlu0 %1437
    %1440 = vset.pattern.permute.xlu0 5
    %1441 = vperm.xlu0 %1440, %v814
    %v1442 = vpop.permute.xlu0 %1441
    %1444 = vset.pattern.permute.xlu0 5
    %1445 = vperm.xlu0 %1444, %v815
    %v1446 = vpop.permute.xlu0 %1445
    %1448 = vset.pattern.permute.xlu0 5
    %1449 = vperm.xlu0 %1448, %v816
    %v1450 = vpop.permute.xlu0 %1449
    %1452 = vset.pattern.permute.xlu0 5
    %1453 = vperm.xlu0 %1452, %v817
    %v1454 = vpop.permute.xlu0 %1453
    %1456 = vset.pattern.permute.xlu0 5
    %1457 = vperm.xlu0 %1456, %v818
    %v1458 = vpop.permute.xlu0 %1457
    %1460 = vset.pattern.permute.xlu0 5
    %1461 = vperm.xlu0 %1460, %v819
    %v1462 = vpop.permute.xlu0 %1461
    %1464 = vset.pattern.permute.xlu0 5
    %1465 = vperm.xlu0 %1464, %v820
    %v1466 = vpop.permute.xlu0 %1465
    %1468 = vset.pattern.permute.xlu0 5
    %1469 = vperm.xlu0 %1468, %v821
    %v1470 = vpop.permute.xlu0 %1469
    %1472 = vset.pattern.permute.xlu0 5
    %1473 = vperm.xlu0 %1472, %v822
    %v1474 = vpop.permute.xlu0 %1473
    %1476 = vset.pattern.permute.xlu0 5
    %1477 = vperm.xlu0 %1476, %v823
    %v1478 = vpop.permute.xlu0 %1477
    %1480 = vset.pattern.permute.xlu0 5
    %1481 = vperm.xlu0 %1480, %v824
    %v1482 = vpop.permute.xlu0 %1481
    %1484 = vset.pattern.permute.xlu0 5
    %1485 = vperm.xlu0 %1484, %v825
    %v1486 = vpop.permute.xlu0 %1485
    %1488 = vset.pattern.permute.xlu0 5
    %1489 = vperm.xlu0 %1488, %v826
    %v1490 = vpop.permute.xlu0 %1489
    %1492 = vset.pattern.permute.xlu0 5
    %1493 = vperm.xlu0 %1492, %v827
    %v1494 = vpop.permute.xlu0 %1493
    %1496 = vset.pattern.permute.xlu0 5
    %1497 = vperm.xlu0 %1496, %v828
    %v1498 = vpop.permute.xlu0 %1497
    %v1500 = vadd.f32 %v735, %v1438
    %v1501 = vadd.f32 %v740, %v1442
    %v1502 = vadd.f32 %v745, %v1446
    %v1503 = vadd.f32 %v750, %v1450
    %v1504 = vadd.f32 %v755, %v1454
    %v1505 = vadd.f32 %v760, %v1458
    %v1506 = vadd.f32 %v765, %v1462
    %v1507 = vadd.f32 %v770, %v1466
    %v1508 = vadd.f32 %v775, %v1470
    %v1509 = vadd.f32 %v780, %v1474
    %v1510 = vadd.f32 %v785, %v1478
    %v1511 = vadd.f32 %v790, %v1482
    %v1512 = vadd.f32 %v795, %v1486
    %v1513 = vadd.f32 %v800, %v1490
    %v1514 = vadd.f32 %v805, %v1494
    %v1515 = vadd.f32 %v810, %v1498
    %v1516 = vsel %vm470, %v1500, -inf
    %v1517 = vsel %vm470, %v1501, -inf
    %v1518 = vsel %vm470, %v1502, -inf
    %v1519 = vsel %vm470, %v1503, -inf
    %v1520 = vsel %vm470, %v1504, -inf
    %v1521 = vmax.f32 %v1516, %v1520
    %v1522 = vsel %vm470, %v1505, -inf
    %v1523 = vmax.f32 %v1517, %v1522
    %v1524 = vsel %vm470, %v1506, -inf
    %v1525 = vmax.f32 %v1518, %v1524
    %v1526 = vsel %vm470, %v1507, -inf
    %v1527 = vmax.f32 %v1519, %v1526
    %v1528 = vsel %vm470, %v1508, -inf
    %v1529 = vmax.f32 %v1521, %v1528
    %v1530 = vsel %vm470, %v1509, -inf
    %v1531 = vmax.f32 %v1523, %v1530
    %v1532 = vsel %vm470, %v1510, -inf
    %v1533 = vmax.f32 %v1525, %v1532
    %v1534 = vsel %vm470, %v1511, -inf
    %v1535 = vmax.f32 %v1527, %v1534
    %v1536 = vsel %vm470, %v1512, -inf
    %v1537 = vmax.f32 %v1529, %v1536
    %v1538 = vsel %vm470, %v1513, -inf
    %v1539 = vmax.f32 %v1531, %v1538
    %v1540 = vsel %vm470, %v1514, -inf
    %v1541 = vmax.f32 %v1533, %v1540
    %v1542 = vsel %vm470, %v1515, -inf
    %v1543 = vmax.f32 %v1535, %v1542
    %v1544 = vmax.f32 %v1537, %v1539
    %v1545 = vmax.f32 %v1541, %v1543
    %v1546 = vmax.f32 %v1544, %v1545
    %v1547 = vrot.slane %v1546, 4
    %v1548 = vmax.f32 %v1546, %v1547
    %v1549 = vrot.slane %v1548, 2
    %v1550 = vmax.f32 %v1548, %v1549
    %v1551 = vrot.slane %v1550, 1
    %v1552 = vmax.f32 %v1550, %v1551
    %1553 = vst.msk [vmem:[#allocation2 + $0x5] sm:$0x1] %vm962, %v1552
    %1554 = vset.pattern.permute.xlu0 6
    %1555 = vperm.xlu0 %1554, %v813
    %v1556 = vpop.permute.xlu0 %1555
    %1558 = vset.pattern.permute.xlu0 6
    %1559 = vperm.xlu0 %1558, %v814
    %v1560 = vpop.permute.xlu0 %1559
    %1562 = vset.pattern.permute.xlu0 6
    %1563 = vperm.xlu0 %1562, %v815
    %v1564 = vpop.permute.xlu0 %1563
    %1566 = vset.pattern.permute.xlu0 6
    %1567 = vperm.xlu0 %1566, %v816
    %v1568 = vpop.permute.xlu0 %1567
    %1570 = vset.pattern.permute.xlu0 6
    %1571 = vperm.xlu0 %1570, %v817
    %v1572 = vpop.permute.xlu0 %1571
    %1574 = vset.pattern.permute.xlu0 6
    %1575 = vperm.xlu0 %1574, %v818
    %v1576 = vpop.permute.xlu0 %1575
    %1578 = vset.pattern.permute.xlu0 6
    %1579 = vperm.xlu0 %1578, %v819
    %v1580 = vpop.permute.xlu0 %1579
    %1582 = vset.pattern.permute.xlu0 6
    %1583 = vperm.xlu0 %1582, %v820
    %v1584 = vpop.permute.xlu0 %1583
    %1586 = vset.pattern.permute.xlu0 6
    %1587 = vperm.xlu0 %1586, %v821
    %v1588 = vpop.permute.xlu0 %1587
    %1590 = vset.pattern.permute.xlu0 6
    %1591 = vperm.xlu0 %1590, %v822
    %v1592 = vpop.permute.xlu0 %1591
    %1594 = vset.pattern.permute.xlu0 6
    %1595 = vperm.xlu0 %1594, %v823
    %v1596 = vpop.permute.xlu0 %1595
    %1598 = vset.pattern.permute.xlu0 6
    %1599 = vperm.xlu0 %1598, %v824
    %v1600 = vpop.permute.xlu0 %1599
    %1602 = vset.pattern.permute.xlu0 6
    %1603 = vperm.xlu0 %1602, %v825
    %v1604 = vpop.permute.xlu0 %1603
    %1606 = vset.pattern.permute.xlu0 6
    %1607 = vperm.xlu0 %1606, %v826
    %v1608 = vpop.permute.xlu0 %1607
    %1610 = vset.pattern.permute.xlu0 6
    %1611 = vperm.xlu0 %1610, %v827
    %v1612 = vpop.permute.xlu0 %1611
    %1614 = vset.pattern.permute.xlu0 6
    %1615 = vperm.xlu0 %1614, %v828
    %v1616 = vpop.permute.xlu0 %1615
    %v1618 = vadd.f32 %v735, %v1556
    %v1619 = vadd.f32 %v740, %v1560
    %v1620 = vadd.f32 %v745, %v1564
    %v1621 = vadd.f32 %v750, %v1568
    %v1622 = vadd.f32 %v755, %v1572
    %v1623 = vadd.f32 %v760, %v1576
    %v1624 = vadd.f32 %v765, %v1580
    %v1625 = vadd.f32 %v770, %v1584
    %v1626 = vadd.f32 %v775, %v1588
    %v1627 = vadd.f32 %v780, %v1592
    %v1628 = vadd.f32 %v785, %v1596
    %v1629 = vadd.f32 %v790, %v1600
    %v1630 = vadd.f32 %v795, %v1604
    %v1631 = vadd.f32 %v800, %v1608
    %v1632 = vadd.f32 %v805, %v1612
    %v1633 = vadd.f32 %v810, %v1616
    %v1634 = vsel %vm470, %v1618, -inf
    %v1635 = vsel %vm470, %v1619, -inf
    %v1636 = vsel %vm470, %v1620, -inf
    %v1637 = vsel %vm470, %v1621, -inf
    %v1638 = vsel %vm470, %v1622, -inf
    %v1639 = vmax.f32 %v1634, %v1638
    %v1640 = vsel %vm470, %v1623, -inf
    %v1641 = vmax.f32 %v1635, %v1640
    %v1642 = vsel %vm470, %v1624, -inf
    %v1643 = vmax.f32 %v1636, %v1642
    %v1644 = vsel %vm470, %v1625, -inf
    %v1645 = vmax.f32 %v1637, %v1644
    %v1646 = vsel %vm470, %v1626, -inf
    %v1647 = vmax.f32 %v1639, %v1646
    %v1648 = vsel %vm470, %v1627, -inf
    %v1649 = vmax.f32 %v1641, %v1648
    %v1650 = vsel %vm470, %v1628, -inf
    %v1651 = vmax.f32 %v1643, %v1650
    %v1652 = vsel %vm470, %v1629, -inf
    %v1653 = vmax.f32 %v1645, %v1652
    %v1654 = vsel %vm470, %v1630, -inf
    %v1655 = vmax.f32 %v1647, %v1654
    %v1656 = vsel %vm470, %v1631, -inf
    %v1657 = vmax.f32 %v1649, %v1656
    %v1658 = vsel %vm470, %v1632, -inf
    %v1659 = vmax.f32 %v1651, %v1658
    %v1660 = vsel %vm470, %v1633, -inf
    %v1661 = vmax.f32 %v1653, %v1660
    %v1662 = vmax.f32 %v1655, %v1657
    %v1663 = vmax.f32 %v1659, %v1661
    %v1664 = vmax.f32 %v1662, %v1663
    %v1665 = vrot.slane %v1664, 4
    %v1666 = vmax.f32 %v1664, %v1665
    %v1667 = vrot.slane %v1666, 2
    %v1668 = vmax.f32 %v1666, %v1667
    %v1669 = vrot.slane %v1668, 1
    %v1670 = vmax.f32 %v1668, %v1669
    %1671 = vst.msk [vmem:[#allocation2 + $0x6] sm:$0x1] %vm962, %v1670
    %1672 = vset.pattern.permute.xlu0 7
    %1673 = vperm.xlu0 %1672, %v813
    %v1674 = vpop.permute.xlu0 %1673
    %1676 = vset.pattern.permute.xlu0 7
    %1677 = vperm.xlu0 %1676, %v814
    %v1678 = vpop.permute.xlu0 %1677
    %1680 = vset.pattern.permute.xlu0 7
    %1681 = vperm.xlu0 %1680, %v815
    %v1682 = vpop.permute.xlu0 %1681
    %1684 = vset.pattern.permute.xlu0 7
    %1685 = vperm.xlu0 %1684, %v816
    %v1686 = vpop.permute.xlu0 %1685
    %1688 = vset.pattern.permute.xlu0 7
    %1689 = vperm.xlu0 %1688, %v817
    %v1690 = vpop.permute.xlu0 %1689
    %1692 = vset.pattern.permute.xlu0 7
    %1693 = vperm.xlu0 %1692, %v818
    %v1694 = vpop.permute.xlu0 %1693
    %1696 = vset.pattern.permute.xlu0 7
    %1697 = vperm.xlu0 %1696, %v819
    %v1698 = vpop.permute.xlu0 %1697
    %1700 = vset.pattern.permute.xlu0 7
    %1701 = vperm.xlu0 %1700, %v820
    %v1702 = vpop.permute.xlu0 %1701
    %1704 = vset.pattern.permute.xlu0 7
    %1705 = vperm.xlu0 %1704, %v821
    %v1706 = vpop.permute.xlu0 %1705
    %1708 = vset.pattern.permute.xlu0 7
    %1709 = vperm.xlu0 %1708, %v822
    %v1710 = vpop.permute.xlu0 %1709
    %1712 = vset.pattern.permute.xlu0 7
    %1713 = vperm.xlu0 %1712, %v823
    %v1714 = vpop.permute.xlu0 %1713
    %1716 = vset.pattern.permute.xlu0 7
    %1717 = vperm.xlu0 %1716, %v824
    %v1718 = vpop.permute.xlu0 %1717
    %1720 = vset.pattern.permute.xlu0 7
    %1721 = vperm.xlu0 %1720, %v825
    %v1722 = vpop.permute.xlu0 %1721
    %1724 = vset.pattern.permute.xlu0 7
    %1725 = vperm.xlu0 %1724, %v826
    %v1726 = vpop.permute.xlu0 %1725
    %1728 = vset.pattern.permute.xlu0 7
    %1729 = vperm.xlu0 %1728, %v827
    %v1730 = vpop.permute.xlu0 %1729
    %1732 = vset.pattern.permute.xlu0 7
    %1733 = vperm.xlu0 %1732, %v828
    %v1734 = vpop.permute.xlu0 %1733
    %v1736 = vadd.f32 %v735, %v1674
    %v1737 = vadd.f32 %v740, %v1678
    %v1738 = vadd.f32 %v745, %v1682
    %v1739 = vadd.f32 %v750, %v1686
    %v1740 = vadd.f32 %v755, %v1690
    %v1741 = vadd.f32 %v760, %v1694
    %v1742 = vadd.f32 %v765, %v1698
    %v1743 = vadd.f32 %v770, %v1702
    %v1744 = vadd.f32 %v775, %v1706
    %v1745 = vadd.f32 %v780, %v1710
    %v1746 = vadd.f32 %v785, %v1714
    %v1747 = vadd.f32 %v790, %v1718
    %v1748 = vadd.f32 %v795, %v1722
    %v1749 = vadd.f32 %v800, %v1726
    %v1750 = vadd.f32 %v805, %v1730
    %v1751 = vadd.f32 %v810, %v1734
    %v1752 = vsel %vm470, %v1736, -inf
    %v1753 = vsel %vm470, %v1737, -inf
    %v1754 = vsel %vm470, %v1738, -inf
    %v1755 = vsel %vm470, %v1739, -inf
    %v1756 = vsel %vm470, %v1740, -inf
    %v1757 = vmax.f32 %v1752, %v1756
    %v1758 = vsel %vm470, %v1741, -inf
    %v1759 = vmax.f32 %v1753, %v1758
    %v1760 = vsel %vm470, %v1742, -inf
    %v1761 = vmax.f32 %v1754, %v1760
    %v1762 = vsel %vm470, %v1743, -inf
    %v1763 = vmax.f32 %v1755, %v1762
    %v1764 = vsel %vm470, %v1744, -inf
    %v1765 = vmax.f32 %v1757, %v1764
    %v1766 = vsel %vm470, %v1745, -inf
    %v1767 = vmax.f32 %v1759, %v1766
    %v1768 = vsel %vm470, %v1746, -inf
    %v1769 = vmax.f32 %v1761, %v1768
    %v1770 = vsel %vm470, %v1747, -inf
    %v1771 = vmax.f32 %v1763, %v1770
    %v1772 = vsel %vm470, %v1748, -inf
    %v1773 = vmax.f32 %v1765, %v1772
    %v1774 = vsel %vm470, %v1749, -inf
    %v1775 = vmax.f32 %v1767, %v1774
    %v1776 = vsel %vm470, %v1750, -inf
    %v1777 = vmax.f32 %v1769, %v1776
    %v1778 = vsel %vm470, %v1751, -inf
    %v1779 = vmax.f32 %v1771, %v1778
    %v1780 = vmax.f32 %v1773, %v1775
    %v1781 = vmax.f32 %v1777, %v1779
    %v1782 = vmax.f32 %v1780, %v1781
    %v1783 = vrot.slane %v1782, 4
    %v1784 = vmax.f32 %v1782, %v1783
    %v1785 = vrot.slane %v1784, 2
    %v1786 = vmax.f32 %v1784, %v1785
    %v1787 = vrot.slane %v1786, 1
    %v1788 = vmax.f32 %v1786, %v1787
    %1789 = vst.msk [vmem:[#allocation2 + $0x7] sm:$0x1] %vm962, %v1788
    %1790 = vset.pattern.permute.xlu0 8
    %1791 = vperm.xlu0 %1790, %v813
    %v1792 = vpop.permute.xlu0 %1791
    %1794 = vset.pattern.permute.xlu0 8
    %1795 = vperm.xlu0 %1794, %v814
    %v1796 = vpop.permute.xlu0 %1795
    %1798 = vset.pattern.permute.xlu0 8
    %1799 = vperm.xlu0 %1798, %v815
    %v1800 = vpop.permute.xlu0 %1799
    %1802 = vset.pattern.permute.xlu0 8
    %1803 = vperm.xlu0 %1802, %v816
    %v1804 = vpop.permute.xlu0 %1803
    %1806 = vset.pattern.permute.xlu0 8
    %1807 = vperm.xlu0 %1806, %v817
    %v1808 = vpop.permute.xlu0 %1807
    %1810 = vset.pattern.permute.xlu0 8
    %1811 = vperm.xlu0 %1810, %v818
    %v1812 = vpop.permute.xlu0 %1811
    %1814 = vset.pattern.permute.xlu0 8
    %1815 = vperm.xlu0 %1814, %v819
    %v1816 = vpop.permute.xlu0 %1815
    %1818 = vset.pattern.permute.xlu0 8
    %1819 = vperm.xlu0 %1818, %v820
    %v1820 = vpop.permute.xlu0 %1819
    %1822 = vset.pattern.permute.xlu0 8
    %1823 = vperm.xlu0 %1822, %v821
    %v1824 = vpop.permute.xlu0 %1823
    %1826 = vset.pattern.permute.xlu0 8
    %1827 = vperm.xlu0 %1826, %v822
    %v1828 = vpop.permute.xlu0 %1827
    %1830 = vset.pattern.permute.xlu0 8
    %1831 = vperm.xlu0 %1830, %v823
    %v1832 = vpop.permute.xlu0 %1831
    %1834 = vset.pattern.permute.xlu0 8
    %1835 = vperm.xlu0 %1834, %v824
    %v1836 = vpop.permute.xlu0 %1835
    %1838 = vset.pattern.permute.xlu0 8
    %1839 = vperm.xlu0 %1838, %v825
    %v1840 = vpop.permute.xlu0 %1839
    %1842 = vset.pattern.permute.xlu0 8
    %1843 = vperm.xlu0 %1842, %v826
    %v1844 = vpop.permute.xlu0 %1843
    %1846 = vset.pattern.permute.xlu0 8
    %1847 = vperm.xlu0 %1846, %v827
    %v1848 = vpop.permute.xlu0 %1847
    %1850 = vset.pattern.permute.xlu0 8
    %1851 = vperm.xlu0 %1850, %v828
    %v1852 = vpop.permute.xlu0 %1851
    %v1854 = vadd.f32 %v735, %v1792
    %v1855 = vadd.f32 %v740, %v1796
    %v1856 = vadd.f32 %v745, %v1800
    %v1857 = vadd.f32 %v750, %v1804
    %v1858 = vadd.f32 %v755, %v1808
    %v1859 = vadd.f32 %v760, %v1812
    %v1860 = vadd.f32 %v765, %v1816
    %v1861 = vadd.f32 %v770, %v1820
    %v1862 = vadd.f32 %v775, %v1824
    %v1863 = vadd.f32 %v780, %v1828
    %v1864 = vadd.f32 %v785, %v1832
    %v1865 = vadd.f32 %v790, %v1836
    %v1866 = vadd.f32 %v795, %v1840
    %v1867 = vadd.f32 %v800, %v1844
    %v1868 = vadd.f32 %v805, %v1848
    %v1869 = vadd.f32 %v810, %v1852
    %v1870 = vsel %vm470, %v1854, -inf
    %v1871 = vsel %vm470, %v1855, -inf
    %v1872 = vsel %vm470, %v1856, -inf
    %v1873 = vsel %vm470, %v1857, -inf
    %v1874 = vsel %vm470, %v1858, -inf
    %v1875 = vmax.f32 %v1870, %v1874
    %v1876 = vsel %vm470, %v1859, -inf
    %v1877 = vmax.f32 %v1871, %v1876
    %v1878 = vsel %vm470, %v1860, -inf
    %v1879 = vmax.f32 %v1872, %v1878
    %v1880 = vsel %vm470, %v1861, -inf
    %v1881 = vmax.f32 %v1873, %v1880
    %v1882 = vsel %vm470, %v1862, -inf
    %v1883 = vmax.f32 %v1875, %v1882
    %v1884 = vsel %vm470, %v1863, -inf
    %v1885 = vmax.f32 %v1877, %v1884
    %v1886 = vsel %vm470, %v1864, -inf
    %v1887 = vmax.f32 %v1879, %v1886
    %v1888 = vsel %vm470, %v1865, -inf
    %v1889 = vmax.f32 %v1881, %v1888
    %v1890 = vsel %vm470, %v1866, -inf
    %v1891 = vmax.f32 %v1883, %v1890
    %v1892 = vsel %vm470, %v1867, -inf
    %v1893 = vmax.f32 %v1885, %v1892
    %v1894 = vsel %vm470, %v1868, -inf
    %v1895 = vmax.f32 %v1887, %v1894
    %v1896 = vsel %vm470, %v1869, -inf
    %v1897 = vmax.f32 %v1889, %v1896
    %v1898 = vmax.f32 %v1891, %v1893
    %v1899 = vmax.f32 %v1895, %v1897
    %v1900 = vmax.f32 %v1898, %v1899
    %v1901 = vrot.slane %v1900, 4
    %v1902 = vmax.f32 %v1900, %v1901
    %v1903 = vrot.slane %v1902, 2
    %v1904 = vmax.f32 %v1902, %v1903
    %v1905 = vrot.slane %v1904, 1
    %v1906 = vmax.f32 %v1904, %v1905
    %1907 = vst.msk [vmem:[#allocation2 + $0x8] sm:$0x1] %vm962, %v1906
    %1908 = vset.pattern.permute.xlu0 9
    %1909 = vperm.xlu0 %1908, %v813
    %v1910 = vpop.permute.xlu0 %1909
    %1912 = vset.pattern.permute.xlu0 9
    %1913 = vperm.xlu0 %1912, %v814
    %v1914 = vpop.permute.xlu0 %1913
    %1916 = vset.pattern.permute.xlu0 9
    %1917 = vperm.xlu0 %1916, %v815
    %v1918 = vpop.permute.xlu0 %1917
    %1920 = vset.pattern.permute.xlu0 9
    %1921 = vperm.xlu0 %1920, %v816
    %v1922 = vpop.permute.xlu0 %1921
    %1924 = vset.pattern.permute.xlu0 9
    %1925 = vperm.xlu0 %1924, %v817
    %v1926 = vpop.permute.xlu0 %1925
    %1928 = vset.pattern.permute.xlu0 9
    %1929 = vperm.xlu0 %1928, %v818
    %v1930 = vpop.permute.xlu0 %1929
    %1932 = vset.pattern.permute.xlu0 9
    %1933 = vperm.xlu0 %1932, %v819
    %v1934 = vpop.permute.xlu0 %1933
    %1936 = vset.pattern.permute.xlu0 9
    %1937 = vperm.xlu0 %1936, %v820
    %v1938 = vpop.permute.xlu0 %1937
    %1940 = vset.pattern.permute.xlu0 9
    %1941 = vperm.xlu0 %1940, %v821
    %v1942 = vpop.permute.xlu0 %1941
    %1944 = vset.pattern.permute.xlu0 9
    %1945 = vperm.xlu0 %1944, %v822
    %v1946 = vpop.permute.xlu0 %1945
    %1948 = vset.pattern.permute.xlu0 9
    %1949 = vperm.xlu0 %1948, %v823
    %v1950 = vpop.permute.xlu0 %1949
    %1952 = vset.pattern.permute.xlu0 9
    %1953 = vperm.xlu0 %1952, %v824
    %v1954 = vpop.permute.xlu0 %1953
    %1956 = vset.pattern.permute.xlu0 9
    %1957 = vperm.xlu0 %1956, %v825
    %v1958 = vpop.permute.xlu0 %1957
    %1960 = vset.pattern.permute.xlu0 9
    %1961 = vperm.xlu0 %1960, %v826
    %v1962 = vpop.permute.xlu0 %1961
    %1964 = vset.pattern.permute.xlu0 9
    %1965 = vperm.xlu0 %1964, %v827
    %v1966 = vpop.permute.xlu0 %1965
    %1968 = vset.pattern.permute.xlu0 9
    %1969 = vperm.xlu0 %1968, %v828
    %v1970 = vpop.permute.xlu0 %1969
    %v1972 = vadd.f32 %v735, %v1910
    %v1973 = vadd.f32 %v740, %v1914
    %v1974 = vadd.f32 %v745, %v1918
    %v1975 = vadd.f32 %v750, %v1922
    %v1976 = vadd.f32 %v755, %v1926
    %v1977 = vadd.f32 %v760, %v1930
    %v1978 = vadd.f32 %v765, %v1934
    %v1979 = vadd.f32 %v770, %v1938
    %v1980 = vadd.f32 %v775, %v1942
    %v1981 = vadd.f32 %v780, %v1946
    %v1982 = vadd.f32 %v785, %v1950
    %v1983 = vadd.f32 %v790, %v1954
    %v1984 = vadd.f32 %v795, %v1958
    %v1985 = vadd.f32 %v800, %v1962
    %v1986 = vadd.f32 %v805, %v1966
    %v1987 = vadd.f32 %v810, %v1970
    %v1988 = vsel %vm470, %v1972, -inf
    %v1989 = vsel %vm470, %v1973, -inf
    %v1990 = vsel %vm470, %v1974, -inf
    %v1991 = vsel %vm470, %v1975, -inf
    %v1992 = vsel %vm470, %v1976, -inf
    %v1993 = vmax.f32 %v1988, %v1992
    %v1994 = vsel %vm470, %v1977, -inf
    %v1995 = vmax.f32 %v1989, %v1994
    %v1996 = vsel %vm470, %v1978, -inf
    %v1997 = vmax.f32 %v1990, %v1996
    %v1998 = vsel %vm470, %v1979, -inf
    %v1999 = vmax.f32 %v1991, %v1998
    %v2000 = vsel %vm470, %v1980, -inf
    %v2001 = vmax.f32 %v1993, %v2000
    %v2002 = vsel %vm470, %v1981, -inf
    %v2003 = vmax.f32 %v1995, %v2002
    %v2004 = vsel %vm470, %v1982, -inf
    %v2005 = vmax.f32 %v1997, %v2004
    %v2006 = vsel %vm470, %v1983, -inf
    %v2007 = vmax.f32 %v1999, %v2006
    %v2008 = vsel %vm470, %v1984, -inf
    %v2009 = vmax.f32 %v2001, %v2008
    %v2010 = vsel %vm470, %v1985, -inf
    %v2011 = vmax.f32 %v2003, %v2010
    %v2012 = vsel %vm470, %v1986, -inf
    %v2013 = vmax.f32 %v2005, %v2012
    %v2014 = vsel %vm470, %v1987, -inf
    %v2015 = vmax.f32 %v2007, %v2014
    %v2016 = vmax.f32 %v2009, %v2011
    %v2017 = vmax.f32 %v2013, %v2015
    %v2018 = vmax.f32 %v2016, %v2017
    %v2019 = vrot.slane %v2018, 4
    %v2020 = vmax.f32 %v2018, %v2019
    %v2021 = vrot.slane %v2020, 2
    %v2022 = vmax.f32 %v2020, %v2021
    %v2023 = vrot.slane %v2022, 1
    %v2024 = vmax.f32 %v2022, %v2023
    %2025 = vst.msk [vmem:[#allocation2 + $0x9] sm:$0x1] %vm962, %v2024
    %2026 = vset.pattern.permute.xlu0 10
    %2027 = vperm.xlu0 %2026, %v813
    %v2028 = vpop.permute.xlu0 %2027
    %2030 = vset.pattern.permute.xlu0 10
    %2031 = vperm.xlu0 %2030, %v814
    %v2032 = vpop.permute.xlu0 %2031
    %2034 = vset.pattern.permute.xlu0 10
    %2035 = vperm.xlu0 %2034, %v815
    %v2036 = vpop.permute.xlu0 %2035
    %2038 = vset.pattern.permute.xlu0 10
    %2039 = vperm.xlu0 %2038, %v816
    %v2040 = vpop.permute.xlu0 %2039
    %2042 = vset.pattern.permute.xlu0 10
    %2043 = vperm.xlu0 %2042, %v817
    %v2044 = vpop.permute.xlu0 %2043
    %2046 = vset.pattern.permute.xlu0 10
    %2047 = vperm.xlu0 %2046, %v818
    %v2048 = vpop.permute.xlu0 %2047
    %2050 = vset.pattern.permute.xlu0 10
    %2051 = vperm.xlu0 %2050, %v819
    %v2052 = vpop.permute.xlu0 %2051
    %2054 = vset.pattern.permute.xlu0 10
    %2055 = vperm.xlu0 %2054, %v820
    %v2056 = vpop.permute.xlu0 %2055
    %2058 = vset.pattern.permute.xlu0 10
    %2059 = vperm.xlu0 %2058, %v821
    %v2060 = vpop.permute.xlu0 %2059
    %2062 = vset.pattern.permute.xlu0 10
    %2063 = vperm.xlu0 %2062, %v822
    %v2064 = vpop.permute.xlu0 %2063
    %2066 = vset.pattern.permute.xlu0 10
    %2067 = vperm.xlu0 %2066, %v823
    %v2068 = vpop.permute.xlu0 %2067
    %2070 = vset.pattern.permute.xlu0 10
    %2071 = vperm.xlu0 %2070, %v824
    %v2072 = vpop.permute.xlu0 %2071
    %2074 = vset.pattern.permute.xlu0 10
    %2075 = vperm.xlu0 %2074, %v825
    %v2076 = vpop.permute.xlu0 %2075
    %2078 = vset.pattern.permute.xlu0 10
    %2079 = vperm.xlu0 %2078, %v826
    %v2080 = vpop.permute.xlu0 %2079
    %2082 = vset.pattern.permute.xlu0 10
    %2083 = vperm.xlu0 %2082, %v827
    %v2084 = vpop.permute.xlu0 %2083
    %2086 = vset.pattern.permute.xlu0 10
    %2087 = vperm.xlu0 %2086, %v828
    %v2088 = vpop.permute.xlu0 %2087
    %v2090 = vadd.f32 %v735, %v2028
    %v2091 = vadd.f32 %v740, %v2032
    %v2092 = vadd.f32 %v745, %v2036
    %v2093 = vadd.f32 %v750, %v2040
    %v2094 = vadd.f32 %v755, %v2044
    %v2095 = vadd.f32 %v760, %v2048
    %v2096 = vadd.f32 %v765, %v2052
    %v2097 = vadd.f32 %v770, %v2056
    %v2098 = vadd.f32 %v775, %v2060
    %v2099 = vadd.f32 %v780, %v2064
    %v2100 = vadd.f32 %v785, %v2068
    %v2101 = vadd.f32 %v790, %v2072
    %v2102 = vadd.f32 %v795, %v2076
    %v2103 = vadd.f32 %v800, %v2080
    %v2104 = vadd.f32 %v805, %v2084
    %v2105 = vadd.f32 %v810, %v2088
    %v2106 = vsel %vm470, %v2090, -inf
    %v2107 = vsel %vm470, %v2091, -inf
    %v2108 = vsel %vm470, %v2092, -inf
    %v2109 = vsel %vm470, %v2093, -inf
    %v2110 = vsel %vm470, %v2094, -inf
    %v2111 = vmax.f32 %v2106, %v2110
    %v2112 = vsel %vm470, %v2095, -inf
    %v2113 = vmax.f32 %v2107, %v2112
    %v2114 = vsel %vm470, %v2096, -inf
    %v2115 = vmax.f32 %v2108, %v2114
    %v2116 = vsel %vm470, %v2097, -inf
    %v2117 = vmax.f32 %v2109, %v2116
    %v2118 = vsel %vm470, %v2098, -inf
    %v2119 = vmax.f32 %v2111, %v2118
    %v2120 = vsel %vm470, %v2099, -inf
    %v2121 = vmax.f32 %v2113, %v2120
    %v2122 = vsel %vm470, %v2100, -inf
    %v2123 = vmax.f32 %v2115, %v2122
    %v2124 = vsel %vm470, %v2101, -inf
    %v2125 = vmax.f32 %v2117, %v2124
    %v2126 = vsel %vm470, %v2102, -inf
    %v2127 = vmax.f32 %v2119, %v2126
    %v2128 = vsel %vm470, %v2103, -inf
    %v2129 = vmax.f32 %v2121, %v2128
    %v2130 = vsel %vm470, %v2104, -inf
    %v2131 = vmax.f32 %v2123, %v2130
    %v2132 = vsel %vm470, %v2105, -inf
    %v2133 = vmax.f32 %v2125, %v2132
    %v2134 = vmax.f32 %v2127, %v2129
    %v2135 = vmax.f32 %v2131, %v2133
    %v2136 = vmax.f32 %v2134, %v2135
    %v2137 = vrot.slane %v2136, 4
    %v2138 = vmax.f32 %v2136, %v2137
    %v2139 = vrot.slane %v2138, 2
    %v2140 = vmax.f32 %v2138, %v2139
    %v2141 = vrot.slane %v2140, 1
    %v2142 = vmax.f32 %v2140, %v2141
    %2143 = vst.msk [vmem:[#allocation2 + $0xa] sm:$0x1] %vm962, %v2142
    %2144 = vset.pattern.permute.xlu0 11
    %2145 = vperm.xlu0 %2144, %v813
    %v2146 = vpop.permute.xlu0 %2145
    %2148 = vset.pattern.permute.xlu0 11
    %2149 = vperm.xlu0 %2148, %v814
    %v2150 = vpop.permute.xlu0 %2149
    %2152 = vset.pattern.permute.xlu0 11
    %2153 = vperm.xlu0 %2152, %v815
    %v2154 = vpop.permute.xlu0 %2153
    %2156 = vset.pattern.permute.xlu0 11
    %2157 = vperm.xlu0 %2156, %v816
    %v2158 = vpop.permute.xlu0 %2157
    %2160 = vset.pattern.permute.xlu0 11
    %2161 = vperm.xlu0 %2160, %v817
    %v2162 = vpop.permute.xlu0 %2161
    %2164 = vset.pattern.permute.xlu0 11
    %2165 = vperm.xlu0 %2164, %v818
    %v2166 = vpop.permute.xlu0 %2165
    %2168 = vset.pattern.permute.xlu0 11
    %2169 = vperm.xlu0 %2168, %v819
    %v2170 = vpop.permute.xlu0 %2169
    %2172 = vset.pattern.permute.xlu0 11
    %2173 = vperm.xlu0 %2172, %v820
    %v2174 = vpop.permute.xlu0 %2173
    %2176 = vset.pattern.permute.xlu0 11
    %2177 = vperm.xlu0 %2176, %v821
    %v2178 = vpop.permute.xlu0 %2177
    %2180 = vset.pattern.permute.xlu0 11
    %2181 = vperm.xlu0 %2180, %v822
    %v2182 = vpop.permute.xlu0 %2181
    %2184 = vset.pattern.permute.xlu0 11
    %2185 = vperm.xlu0 %2184, %v823
    %v2186 = vpop.permute.xlu0 %2185
    %2188 = vset.pattern.permute.xlu0 11
    %2189 = vperm.xlu0 %2188, %v824
    %v2190 = vpop.permute.xlu0 %2189
    %2192 = vset.pattern.permute.xlu0 11
    %2193 = vperm.xlu0 %2192, %v825
    %v2194 = vpop.permute.xlu0 %2193
    %2196 = vset.pattern.permute.xlu0 11
    %2197 = vperm.xlu0 %2196, %v826
    %v2198 = vpop.permute.xlu0 %2197
    %2200 = vset.pattern.permute.xlu0 11
    %2201 = vperm.xlu0 %2200, %v827
    %v2202 = vpop.permute.xlu0 %2201
    %2204 = vset.pattern.permute.xlu0 11
    %2205 = vperm.xlu0 %2204, %v828
    %v2206 = vpop.permute.xlu0 %2205
    %v2208 = vadd.f32 %v735, %v2146
    %v2209 = vadd.f32 %v740, %v2150
    %v2210 = vadd.f32 %v745, %v2154
    %v2211 = vadd.f32 %v750, %v2158
    %v2212 = vadd.f32 %v755, %v2162
    %v2213 = vadd.f32 %v760, %v2166
    %v2214 = vadd.f32 %v765, %v2170
    %v2215 = vadd.f32 %v770, %v2174
    %v2216 = vadd.f32 %v775, %v2178
    %v2217 = vadd.f32 %v780, %v2182
    %v2218 = vadd.f32 %v785, %v2186
    %v2219 = vadd.f32 %v790, %v2190
    %v2220 = vadd.f32 %v795, %v2194
    %v2221 = vadd.f32 %v800, %v2198
    %v2222 = vadd.f32 %v805, %v2202
    %v2223 = vadd.f32 %v810, %v2206
    %v2224 = vsel %vm470, %v2208, -inf
    %v2225 = vsel %vm470, %v2209, -inf
    %v2226 = vsel %vm470, %v2210, -inf
    %v2227 = vsel %vm470, %v2211, -inf
    %v2228 = vsel %vm470, %v2212, -inf
    %v2229 = vmax.f32 %v2224, %v2228
    %v2230 = vsel %vm470, %v2213, -inf
    %v2231 = vmax.f32 %v2225, %v2230
    %v2232 = vsel %vm470, %v2214, -inf
    %v2233 = vmax.f32 %v2226, %v2232
    %v2234 = vsel %vm470, %v2215, -inf
    %v2235 = vmax.f32 %v2227, %v2234
    %v2236 = vsel %vm470, %v2216, -inf
    %v2237 = vmax.f32 %v2229, %v2236
    %v2238 = vsel %vm470, %v2217, -inf
    %v2239 = vmax.f32 %v2231, %v2238
    %v2240 = vsel %vm470, %v2218, -inf
    %v2241 = vmax.f32 %v2233, %v2240
    %v2242 = vsel %vm470, %v2219, -inf
    %v2243 = vmax.f32 %v2235, %v2242
    %v2244 = vsel %vm470, %v2220, -inf
    %v2245 = vmax.f32 %v2237, %v2244
    %v2246 = vsel %vm470, %v2221, -inf
    %v2247 = vmax.f32 %v2239, %v2246
    %v2248 = vsel %vm470, %v2222, -inf
    %v2249 = vmax.f32 %v2241, %v2248
    %v2250 = vsel %vm470, %v2223, -inf
    %v2251 = vmax.f32 %v2243, %v2250
    %v2252 = vmax.f32 %v2245, %v2247
    %v2253 = vmax.f32 %v2249, %v2251
    %v2254 = vmax.f32 %v2252, %v2253
    %v2255 = vrot.slane %v2254, 4
    %v2256 = vmax.f32 %v2254, %v2255
    %v2257 = vrot.slane %v2256, 2
    %v2258 = vmax.f32 %v2256, %v2257
    %v2259 = vrot.slane %v2258, 1
    %v2260 = vmax.f32 %v2258, %v2259
    %2261 = vst.msk [vmem:[#allocation2 + $0xb] sm:$0x1] %vm962, %v2260
    %2262 = vset.pattern.permute.xlu0 12
    %2263 = vperm.xlu0 %2262, %v813
    %v2264 = vpop.permute.xlu0 %2263
    %2266 = vset.pattern.permute.xlu0 12
    %2267 = vperm.xlu0 %2266, %v814
    %v2268 = vpop.permute.xlu0 %2267
    %2270 = vset.pattern.permute.xlu0 12
    %2271 = vperm.xlu0 %2270, %v815
    %v2272 = vpop.permute.xlu0 %2271
    %2274 = vset.pattern.permute.xlu0 12
    %2275 = vperm.xlu0 %2274, %v816
    %v2276 = vpop.permute.xlu0 %2275
    %2278 = vset.pattern.permute.xlu0 12
    %2279 = vperm.xlu0 %2278, %v817
    %v2280 = vpop.permute.xlu0 %2279
    %2282 = vset.pattern.permute.xlu0 12
    %2283 = vperm.xlu0 %2282, %v818
    %v2284 = vpop.permute.xlu0 %2283
    %2286 = vset.pattern.permute.xlu0 12
    %2287 = vperm.xlu0 %2286, %v819
    %v2288 = vpop.permute.xlu0 %2287
    %2290 = vset.pattern.permute.xlu0 12
    %2291 = vperm.xlu0 %2290, %v820
    %v2292 = vpop.permute.xlu0 %2291
    %2294 = vset.pattern.permute.xlu0 12
    %2295 = vperm.xlu0 %2294, %v821
    %v2296 = vpop.permute.xlu0 %2295
    %2298 = vset.pattern.permute.xlu0 12
    %2299 = vperm.xlu0 %2298, %v822
    %v2300 = vpop.permute.xlu0 %2299
    %2302 = vset.pattern.permute.xlu0 12
    %2303 = vperm.xlu0 %2302, %v823
    %v2304 = vpop.permute.xlu0 %2303
    %2306 = vset.pattern.permute.xlu0 12
    %2307 = vperm.xlu0 %2306, %v824
    %v2308 = vpop.permute.xlu0 %2307
    %2310 = vset.pattern.permute.xlu0 12
    %2311 = vperm.xlu0 %2310, %v825
    %v2312 = vpop.permute.xlu0 %2311
    %2314 = vset.pattern.permute.xlu0 12
    %2315 = vperm.xlu0 %2314, %v826
    %v2316 = vpop.permute.xlu0 %2315
    %2318 = vset.pattern.permute.xlu0 12
    %2319 = vperm.xlu0 %2318, %v827
    %v2320 = vpop.permute.xlu0 %2319
    %2322 = vset.pattern.permute.xlu0 12
    %2323 = vperm.xlu0 %2322, %v828
    %v2324 = vpop.permute.xlu0 %2323
    %v2326 = vadd.f32 %v735, %v2264
    %v2327 = vadd.f32 %v740, %v2268
    %v2328 = vadd.f32 %v745, %v2272
    %v2329 = vadd.f32 %v750, %v2276
    %v2330 = vadd.f32 %v755, %v2280
    %v2331 = vadd.f32 %v760, %v2284
    %v2332 = vadd.f32 %v765, %v2288
    %v2333 = vadd.f32 %v770, %v2292
    %v2334 = vadd.f32 %v775, %v2296
    %v2335 = vadd.f32 %v780, %v2300
    %v2336 = vadd.f32 %v785, %v2304
    %v2337 = vadd.f32 %v790, %v2308
    %v2338 = vadd.f32 %v795, %v2312
    %v2339 = vadd.f32 %v800, %v2316
    %v2340 = vadd.f32 %v805, %v2320
    %v2341 = vadd.f32 %v810, %v2324
    %v2342 = vsel %vm470, %v2326, -inf
    %v2343 = vsel %vm470, %v2327, -inf
    %v2344 = vsel %vm470, %v2328, -inf
    %v2345 = vsel %vm470, %v2329, -inf
    %v2346 = vsel %vm470, %v2330, -inf
    %v2347 = vmax.f32 %v2342, %v2346
    %v2348 = vsel %vm470, %v2331, -inf
    %v2349 = vmax.f32 %v2343, %v2348
    %v2350 = vsel %vm470, %v2332, -inf
    %v2351 = vmax.f32 %v2344, %v2350
    %v2352 = vsel %vm470, %v2333, -inf
    %v2353 = vmax.f32 %v2345, %v2352
    %v2354 = vsel %vm470, %v2334, -inf
    %v2355 = vmax.f32 %v2347, %v2354
    %v2356 = vsel %vm470, %v2335, -inf
    %v2357 = vmax.f32 %v2349, %v2356
    %v2358 = vsel %vm470, %v2336, -inf
    %v2359 = vmax.f32 %v2351, %v2358
    %v2360 = vsel %vm470, %v2337, -inf
    %v2361 = vmax.f32 %v2353, %v2360
    %v2362 = vsel %vm470, %v2338, -inf
    %v2363 = vmax.f32 %v2355, %v2362
    %v2364 = vsel %vm470, %v2339, -inf
    %v2365 = vmax.f32 %v2357, %v2364
    %v2366 = vsel %vm470, %v2340, -inf
    %v2367 = vmax.f32 %v2359, %v2366
    %v2368 = vsel %vm470, %v2341, -inf
    %v2369 = vmax.f32 %v2361, %v2368
    %v2370 = vmax.f32 %v2363, %v2365
    %v2371 = vmax.f32 %v2367, %v2369
    %v2372 = vmax.f32 %v2370, %v2371
    %v2373 = vrot.slane %v2372, 4
    %v2374 = vmax.f32 %v2372, %v2373
    %v2375 = vrot.slane %v2374, 2
    %v2376 = vmax.f32 %v2374, %v2375
    %v2377 = vrot.slane %v2376, 1
    %v2378 = vmax.f32 %v2376, %v2377
    %2379 = vst.msk [vmem:[#allocation2 + $0xc] sm:$0x1] %vm962, %v2378
    %2380 = vset.pattern.permute.xlu0 13
    %2381 = vperm.xlu0 %2380, %v813
    %v2382 = vpop.permute.xlu0 %2381
    %2384 = vset.pattern.permute.xlu0 13
    %2385 = vperm.xlu0 %2384, %v814
    %v2386 = vpop.permute.xlu0 %2385
    %2388 = vset.pattern.permute.xlu0 13
    %2389 = vperm.xlu0 %2388, %v815
    %v2390 = vpop.permute.xlu0 %2389
    %2392 = vset.pattern.permute.xlu0 13
    %2393 = vperm.xlu0 %2392, %v816
    %v2394 = vpop.permute.xlu0 %2393
    %2396 = vset.pattern.permute.xlu0 13
    %2397 = vperm.xlu0 %2396, %v817
    %v2398 = vpop.permute.xlu0 %2397
    %2400 = vset.pattern.permute.xlu0 13
    %2401 = vperm.xlu0 %2400, %v818
    %v2402 = vpop.permute.xlu0 %2401
    %2404 = vset.pattern.permute.xlu0 13
    %2405 = vperm.xlu0 %2404, %v819
    %v2406 = vpop.permute.xlu0 %2405
    %2408 = vset.pattern.permute.xlu0 13
    %2409 = vperm.xlu0 %2408, %v820
    %v2410 = vpop.permute.xlu0 %2409
    %2412 = vset.pattern.permute.xlu0 13
    %2413 = vperm.xlu0 %2412, %v821
    %v2414 = vpop.permute.xlu0 %2413
    %2416 = vset.pattern.permute.xlu0 13
    %2417 = vperm.xlu0 %2416, %v822
    %v2418 = vpop.permute.xlu0 %2417
    %2420 = vset.pattern.permute.xlu0 13
    %2421 = vperm.xlu0 %2420, %v823
    %v2422 = vpop.permute.xlu0 %2421
    %2424 = vset.pattern.permute.xlu0 13
    %2425 = vperm.xlu0 %2424, %v824
    %v2426 = vpop.permute.xlu0 %2425
    %2428 = vset.pattern.permute.xlu0 13
    %2429 = vperm.xlu0 %2428, %v825
    %v2430 = vpop.permute.xlu0 %2429
    %2432 = vset.pattern.permute.xlu0 13
    %2433 = vperm.xlu0 %2432, %v826
    %v2434 = vpop.permute.xlu0 %2433
    %2436 = vset.pattern.permute.xlu0 13
    %2437 = vperm.xlu0 %2436, %v827
    %v2438 = vpop.permute.xlu0 %2437
    %2440 = vset.pattern.permute.xlu0 13
    %2441 = vperm.xlu0 %2440, %v828
    %v2442 = vpop.permute.xlu0 %2441
    %v2444 = vadd.f32 %v735, %v2382
    %v2445 = vadd.f32 %v740, %v2386
    %v2446 = vadd.f32 %v745, %v2390
    %v2447 = vadd.f32 %v750, %v2394
    %v2448 = vadd.f32 %v755, %v2398
    %v2449 = vadd.f32 %v760, %v2402
    %v2450 = vadd.f32 %v765, %v2406
    %v2451 = vadd.f32 %v770, %v2410
    %v2452 = vadd.f32 %v775, %v2414
    %v2453 = vadd.f32 %v780, %v2418
    %v2454 = vadd.f32 %v785, %v2422
    %v2455 = vadd.f32 %v790, %v2426
    %v2456 = vadd.f32 %v795, %v2430
    %v2457 = vadd.f32 %v800, %v2434
    %v2458 = vadd.f32 %v805, %v2438
    %v2459 = vadd.f32 %v810, %v2442
    %v2460 = vsel %vm470, %v2444, -inf
    %v2461 = vsel %vm470, %v2445, -inf
    %v2462 = vsel %vm470, %v2446, -inf
    %v2463 = vsel %vm470, %v2447, -inf
    %v2464 = vsel %vm470, %v2448, -inf
    %v2465 = vmax.f32 %v2460, %v2464
    %v2466 = vsel %vm470, %v2449, -inf
    %v2467 = vmax.f32 %v2461, %v2466
    %v2468 = vsel %vm470, %v2450, -inf
    %v2469 = vmax.f32 %v2462, %v2468
    %v2470 = vsel %vm470, %v2451, -inf
    %v2471 = vmax.f32 %v2463, %v2470
    %v2472 = vsel %vm470, %v2452, -inf
    %v2473 = vmax.f32 %v2465, %v2472
    %v2474 = vsel %vm470, %v2453, -inf
    %v2475 = vmax.f32 %v2467, %v2474
    %v2476 = vsel %vm470, %v2454, -inf
    %v2477 = vmax.f32 %v2469, %v2476
    %v2478 = vsel %vm470, %v2455, -inf
    %v2479 = vmax.f32 %v2471, %v2478
    %v2480 = vsel %vm470, %v2456, -inf
    %v2481 = vmax.f32 %v2473, %v2480
    %v2482 = vsel %vm470, %v2457, -inf
    %v2483 = vmax.f32 %v2475, %v2482
    %v2484 = vsel %vm470, %v2458, -inf
    %v2485 = vmax.f32 %v2477, %v2484
    %v2486 = vsel %vm470, %v2459, -inf
    %v2487 = vmax.f32 %v2479, %v2486
    %v2488 = vmax.f32 %v2481, %v2483
    %v2489 = vmax.f32 %v2485, %v2487
    %v2490 = vmax.f32 %v2488, %v2489
    %v2491 = vrot.slane %v2490, 4
    %v2492 = vmax.f32 %v2490, %v2491
    %v2493 = vrot.slane %v2492, 2
    %v2494 = vmax.f32 %v2492, %v2493
    %v2495 = vrot.slane %v2494, 1
    %v2496 = vmax.f32 %v2494, %v2495
    %2497 = vst.msk [vmem:[#allocation2 + $0xd] sm:$0x1] %vm962, %v2496
    %2498 = vset.pattern.permute.xlu0 14
    %2499 = vperm.xlu0 %2498, %v813
    %v2500 = vpop.permute.xlu0 %2499
    %2502 = vset.pattern.permute.xlu0 14
    %2503 = vperm.xlu0 %2502, %v814
    %v2504 = vpop.permute.xlu0 %2503
    %2506 = vset.pattern.permute.xlu0 14
    %2507 = vperm.xlu0 %2506, %v815
    %v2508 = vpop.permute.xlu0 %2507
    %2510 = vset.pattern.permute.xlu0 14
    %2511 = vperm.xlu0 %2510, %v816
    %v2512 = vpop.permute.xlu0 %2511
    %2514 = vset.pattern.permute.xlu0 14
    %2515 = vperm.xlu0 %2514, %v817
    %v2516 = vpop.permute.xlu0 %2515
    %2518 = vset.pattern.permute.xlu0 14
    %2519 = vperm.xlu0 %2518, %v818
    %v2520 = vpop.permute.xlu0 %2519
    %2522 = vset.pattern.permute.xlu0 14
    %2523 = vperm.xlu0 %2522, %v819
    %v2524 = vpop.permute.xlu0 %2523
    %2526 = vset.pattern.permute.xlu0 14
    %2527 = vperm.xlu0 %2526, %v820
    %v2528 = vpop.permute.xlu0 %2527
    %2530 = vset.pattern.permute.xlu0 14
    %2531 = vperm.xlu0 %2530, %v821
    %v2532 = vpop.permute.xlu0 %2531
    %2534 = vset.pattern.permute.xlu0 14
    %2535 = vperm.xlu0 %2534, %v822
    %v2536 = vpop.permute.xlu0 %2535
    %2538 = vset.pattern.permute.xlu0 14
    %2539 = vperm.xlu0 %2538, %v823
    %v2540 = vpop.permute.xlu0 %2539
    %2542 = vset.pattern.permute.xlu0 14
    %2543 = vperm.xlu0 %2542, %v824
    %v2544 = vpop.permute.xlu0 %2543
    %2546 = vset.pattern.permute.xlu0 14
    %2547 = vperm.xlu0 %2546, %v825
    %v2548 = vpop.permute.xlu0 %2547
    %2550 = vset.pattern.permute.xlu0 14
    %2551 = vperm.xlu0 %2550, %v826
    %v2552 = vpop.permute.xlu0 %2551
    %2554 = vset.pattern.permute.xlu0 14
    %2555 = vperm.xlu0 %2554, %v827
    %v2556 = vpop.permute.xlu0 %2555
    %2558 = vset.pattern.permute.xlu0 14
    %2559 = vperm.xlu0 %2558, %v828
    %v2560 = vpop.permute.xlu0 %2559
    %v2562 = vadd.f32 %v735, %v2500
    %v2563 = vadd.f32 %v740, %v2504
    %v2564 = vadd.f32 %v745, %v2508
    %v2565 = vadd.f32 %v750, %v2512
    %v2566 = vadd.f32 %v755, %v2516
    %v2567 = vadd.f32 %v760, %v2520
    %v2568 = vadd.f32 %v765, %v2524
    %v2569 = vadd.f32 %v770, %v2528
    %v2570 = vadd.f32 %v775, %v2532
    %v2571 = vadd.f32 %v780, %v2536
    %v2572 = vadd.f32 %v785, %v2540
    %v2573 = vadd.f32 %v790, %v2544
    %v2574 = vadd.f32 %v795, %v2548
    %v2575 = vadd.f32 %v800, %v2552
    %v2576 = vadd.f32 %v805, %v2556
    %v2577 = vadd.f32 %v810, %v2560
    %v2578 = vsel %vm470, %v2562, -inf
    %v2579 = vsel %vm470, %v2563, -inf
    %v2580 = vsel %vm470, %v2564, -inf
    %v2581 = vsel %vm470, %v2565, -inf
    %v2582 = vsel %vm470, %v2566, -inf
    %v2583 = vmax.f32 %v2578, %v2582
    %v2584 = vsel %vm470, %v2567, -inf
    %v2585 = vmax.f32 %v2579, %v2584
    %v2586 = vsel %vm470, %v2568, -inf
    %v2587 = vmax.f32 %v2580, %v2586
    %v2588 = vsel %vm470, %v2569, -inf
    %v2589 = vmax.f32 %v2581, %v2588
    %v2590 = vsel %vm470, %v2570, -inf
    %v2591 = vmax.f32 %v2583, %v2590
    %v2592 = vsel %vm470, %v2571, -inf
    %v2593 = vmax.f32 %v2585, %v2592
    %v2594 = vsel %vm470, %v2572, -inf
    %v2595 = vmax.f32 %v2587, %v2594
    %v2596 = vsel %vm470, %v2573, -inf
    %v2597 = vmax.f32 %v2589, %v2596
    %v2598 = vsel %vm470, %v2574, -inf
    %v2599 = vmax.f32 %v2591, %v2598
    %v2600 = vsel %vm470, %v2575, -inf
    %v2601 = vmax.f32 %v2593, %v2600
    %v2602 = vsel %vm470, %v2576, -inf
    %v2603 = vmax.f32 %v2595, %v2602
    %v2604 = vsel %vm470, %v2577, -inf
    %v2605 = vmax.f32 %v2597, %v2604
    %v2606 = vmax.f32 %v2599, %v2601
    %v2607 = vmax.f32 %v2603, %v2605
    %v2608 = vmax.f32 %v2606, %v2607
    %v2609 = vrot.slane %v2608, 4
    %v2610 = vmax.f32 %v2608, %v2609
    %v2611 = vrot.slane %v2610, 2
    %v2612 = vmax.f32 %v2610, %v2611
    %v2613 = vrot.slane %v2612, 1
    %v2614 = vmax.f32 %v2612, %v2613
    %2615 = vst.msk [vmem:[#allocation2 + $0xe] sm:$0x1] %vm962, %v2614
    %2616 = vset.pattern.permute.xlu0 15
    %2617 = vperm.xlu0 %2616, %v813
    %v2618 = vpop.permute.xlu0 %2617
    %2620 = vset.pattern.permute.xlu0 15
    %2621 = vperm.xlu0 %2620, %v814
    %v2622 = vpop.permute.xlu0 %2621
    %2624 = vset.pattern.permute.xlu0 15
    %2625 = vperm.xlu0 %2624, %v815
    %v2626 = vpop.permute.xlu0 %2625
    %2628 = vset.pattern.permute.xlu0 15
    %2629 = vperm.xlu0 %2628, %v816
    %v2630 = vpop.permute.xlu0 %2629
    %2632 = vset.pattern.permute.xlu0 15
    %2633 = vperm.xlu0 %2632, %v817
    %v2634 = vpop.permute.xlu0 %2633
    %2636 = vset.pattern.permute.xlu0 15
    %2637 = vperm.xlu0 %2636, %v818
    %v2638 = vpop.permute.xlu0 %2637
    %2640 = vset.pattern.permute.xlu0 15
    %2641 = vperm.xlu0 %2640, %v819
    %v2642 = vpop.permute.xlu0 %2641
    %2644 = vset.pattern.permute.xlu0 15
    %2645 = vperm.xlu0 %2644, %v820
    %v2646 = vpop.permute.xlu0 %2645
    %2648 = vset.pattern.permute.xlu0 15
    %2649 = vperm.xlu0 %2648, %v821
    %v2650 = vpop.permute.xlu0 %2649
    %2652 = vset.pattern.permute.xlu0 15
    %2653 = vperm.xlu0 %2652, %v822
    %v2654 = vpop.permute.xlu0 %2653
    %2656 = vset.pattern.permute.xlu0 15
    %2657 = vperm.xlu0 %2656, %v823
    %v2658 = vpop.permute.xlu0 %2657
    %2660 = vset.pattern.permute.xlu0 15
    %2661 = vperm.xlu0 %2660, %v824
    %v2662 = vpop.permute.xlu0 %2661
    %2664 = vset.pattern.permute.xlu0 15
    %2665 = vperm.xlu0 %2664, %v825
    %v2666 = vpop.permute.xlu0 %2665
    %2668 = vset.pattern.permute.xlu0 15
    %2669 = vperm.xlu0 %2668, %v826
    %v2670 = vpop.permute.xlu0 %2669
    %2672 = vset.pattern.permute.xlu0 15
    %2673 = vperm.xlu0 %2672, %v827
    %v2674 = vpop.permute.xlu0 %2673
    %2676 = vset.pattern.permute.xlu0 15
    %2677 = vperm.xlu0 %2676, %v828
    %v2678 = vpop.permute.xlu0 %2677
    %v2680 = vadd.f32 %v735, %v2618
    %v2681 = vadd.f32 %v740, %v2622
    %v2682 = vadd.f32 %v745, %v2626
    %v2683 = vadd.f32 %v750, %v2630
    %v2684 = vadd.f32 %v755, %v2634
    %v2685 = vadd.f32 %v760, %v2638
    %v2686 = vadd.f32 %v765, %v2642
    %v2687 = vadd.f32 %v770, %v2646
    %v2688 = vadd.f32 %v775, %v2650
    %v2689 = vadd.f32 %v780, %v2654
    %v2690 = vadd.f32 %v785, %v2658
    %v2691 = vadd.f32 %v790, %v2662
    %v2692 = vadd.f32 %v795, %v2666
    %v2693 = vadd.f32 %v800, %v2670
    %v2694 = vadd.f32 %v805, %v2674
    %v2695 = vadd.f32 %v810, %v2678
    %v2696 = vsel %vm470, %v2680, -inf
    %v2697 = vsel %vm470, %v2681, -inf
    %v2698 = vsel %vm470, %v2682, -inf
    %v2699 = vsel %vm470, %v2683, -inf
    %v2700 = vsel %vm470, %v2684, -inf
    %v2701 = vmax.f32 %v2696, %v2700
    %v2702 = vsel %vm470, %v2685, -inf
    %v2703 = vmax.f32 %v2697, %v2702
    %v2704 = vsel %vm470, %v2686, -inf
    %v2705 = vmax.f32 %v2698, %v2704
    %v2706 = vsel %vm470, %v2687, -inf
    %v2707 = vmax.f32 %v2699, %v2706
    %v2708 = vsel %vm470, %v2688, -inf
    %v2709 = vmax.f32 %v2701, %v2708
    %v2710 = vsel %vm470, %v2689, -inf
    %v2711 = vmax.f32 %v2703, %v2710
    %v2712 = vsel %vm470, %v2690, -inf
    %v2713 = vmax.f32 %v2705, %v2712
    %v2714 = vsel %vm470, %v2691, -inf
    %v2715 = vmax.f32 %v2707, %v2714
    %v2716 = vsel %vm470, %v2692, -inf
    %v2717 = vmax.f32 %v2709, %v2716
    %v2718 = vsel %vm470, %v2693, -inf
    %v2719 = vmax.f32 %v2711, %v2718
    %v2720 = vsel %vm470, %v2694, -inf
    %v2721 = vmax.f32 %v2713, %v2720
    %v2722 = vsel %vm470, %v2695, -inf
    %v2723 = vmax.f32 %v2715, %v2722
    %v2724 = vmax.f32 %v2717, %v2719
    %v2725 = vmax.f32 %v2721, %v2723
    %v2726 = vmax.f32 %v2724, %v2725
    %v2727 = vrot.slane %v2726, 4
    %v2728 = vmax.f32 %v2726, %v2727
    %v2729 = vrot.slane %v2728, 2
    %v2730 = vmax.f32 %v2728, %v2729
    %v2731 = vrot.slane %v2730, 1
    %v2732 = vmax.f32 %v2730, %v2731
    %2733 = vst.msk [vmem:[#allocation2 + $0xf] sm:$0x1] %vm962, %v2732
    %v2734 = vld [vmem:[#allocation2] sm:$0xff]
    %v2735 = vld [vmem:[#allocation2 + $0x8] sm:$0xff]
    %v2736 = vlaneseq
    %v2737 = vshrl.u32 %v2736, 7
    %v2738 = vsub.s32 2, %v2737
    %v2739 = vrot.slane %v69, %v2738
    %v2741 = vsel %vm470, %v2734, 0
    %v2744 = vsel %vm470, %v2735, 0
    %2746 = vmatprep.subr.mxu0 0.0
    %2747 = vmatpush1.msra.mxu0 0.0
    %2748 = vmatprep.subr.mxu0 0.0
    %2749 = vmatpush1.msra.mxu0 0.0
    %2750 = vmatprep.subr.mxu0 0.0
    %2751 = vmatpush1.msra.mxu0 0.0
    %2752 = vmatprep.subr.mxu0 0.0
    %2753 = vmatpush1.msra.mxu0 0.0
    %2754 = vmatprep.subr.mxu0 0.0
    %2755 = vmatpush1.msra.mxu0 0.0
    %2756 = vmatprep.subr.mxu0 0.0
    %2757 = vmatpush1.msra.mxu0 0.0
    %2758 = vmatprep.subr.mxu0 0.0
    %2759 = vmatpush1.msra.mxu0 0.0
    %2760 = vmatprep.subr.mxu0 0.0
    %2761 = vmatpush1.msra.mxu0 0.0
    %2762 = vmatprep.subr.mxu0 0.0
    %2763 = vmatpush1.msra.mxu0 0.0
    %2764 = vmatprep.subr.mxu0 0.0
    %2765 = vmatpush1.msra.mxu0 0.0
    %2766 = vmatprep.subr.mxu0 0.0
    %2767 = vmatpush1.msra.mxu0 0.0
    %2768 = vmatprep.subr.mxu0 0.0
    %2769 = vmatpush1.msra.mxu0 0.0
    %2770 = vmatprep.subr.mxu0 0.0
    %2771 = vmatpush1.msra.mxu0 %v78
    %2772 = vmatprep.subr.mxu0 0.0
    %2773 = vmatpush1.msra.mxu0 %v77
    %2774 = vmatprep.subr.mxu0 0.0
    %2775 = vmatpush1.msra.mxu0 %v76
    %2776 = vmatprep.subr.mxu0 0.0
    %2777 = vmatpush1.msra.mxu0 %v75
    %2778 = vmatprep.subr.mxu0 0.0
    %2779 = vmatpush2.msra.mxu0 0.0
    %2780 = vmatprep.subr.mxu0 0.0
    %2781 = vmatpush2.msra.mxu0 0.0
    %2782 = vmatprep.subr.mxu0 0.0
    %2783 = vmatpush2.msra.mxu0 0.0
    %2784 = vmatprep.subr.mxu0 0.0
    %2785 = vmatpush2.msra.mxu0 0.0
    %2786 = vmatprep.subr.mxu0 0.0
    %2787 = vmatpush2.msra.mxu0 0.0
    %2788 = vmatprep.subr.mxu0 0.0
    %2789 = vmatpush2.msra.mxu0 0.0
    %2790 = vmatprep.subr.mxu0 0.0
    %2791 = vmatpush2.msra.mxu0 0.0
    %2792 = vmatprep.subr.mxu0 0.0
    %2793 = vmatpush2.msra.mxu0 0.0
    %2794 = vmatprep.subr.mxu0 0.0
    %2795 = vmatpush2.msra.mxu0 0.0
    %2796 = vmatprep.subr.mxu0 0.0
    %2797 = vmatpush2.msra.mxu0 0.0
    %2798 = vmatprep.subr.mxu0 0.0
    %2799 = vmatpush2.msra.mxu0 0.0
    %2800 = vmatprep.subr.mxu0 0.0
    %2801 = vmatpush2.msra.mxu0 0.0
    %2802 = vmatprep.subr.mxu0 0.0
    %2803 = vmatpush2.msra.mxu0 0.0
    %2804 = vmatprep.subr.mxu0 0.0
    %2805 = vmatpush2.msra.mxu0 0.0
    %2806 = vmatprep.subr.mxu0 0.0
    %2807 = vmatpush2.msra.mxu0 0.0
    %2808 = vmatprep.subr.mxu0 0.0
    %2809 = vmatpush2.msra.mxu0 0.0
    %2810 = vmatprep.mubr.f32.mxu0 0.0
    %2811 = vmatmul.mubr.f32.gmra.mxu0 %v2741
    %v2812 = vpop.f32.mrf.mxu0
    %v2813 = vadd.f32 %v2739, %v2812
    %v2814 = vpop.f32.mrf.mxu0
    %2815 = vmatprep.mubr.f32.mxu0 0.0
    %2816 = vmatmul.mubr.f32.gmra.mxu0 %v2744
    %v2817 = vpop.f32.mrf.mxu0
    %v2818 = vadd.f32 %v2739, %v2817
    %v2819 = vpop.f32.mrf.mxu0
    %2820 = vdwg.mxu0
    %v2821 = vmax.f32 %v2813, 0.0
    %v2822 = vmax.f32 %v2818, 0.0
    %v2823 = vlaneseq
    %v2824 = vshrl.u32 %v2823, 7
    %v2825 = vsub.s32 3, %v2824
    %v2826 = vrot.slane %v69, %v2825
    %2827 = vmatprep.subr.mxu0 0.0
    %2828 = vmatpush1.msra.mxu0 %v94
    %2829 = vmatprep.subr.mxu0 0.0
    %2830 = vmatpush1.msra.mxu0 %v93
    %2831 = vmatprep.subr.mxu0 0.0
    %2832 = vmatpush1.msra.mxu0 %v92
    %2833 = vmatprep.subr.mxu0 0.0
    %2834 = vmatpush1.msra.mxu0 %v91
    %2835 = vmatprep.subr.mxu0 0.0
    %2836 = vmatpush1.msra.mxu0 %v90
    %2837 = vmatprep.subr.mxu0 0.0
    %2838 = vmatpush1.msra.mxu0 %v89
    %2839 = vmatprep.subr.mxu0 0.0
    %2840 = vmatpush1.msra.mxu0 %v88
    %2841 = vmatprep.subr.mxu0 0.0
    %2842 = vmatpush1.msra.mxu0 %v87
    %2843 = vmatprep.subr.mxu0 0.0
    %2844 = vmatpush1.msra.mxu0 %v86
    %2845 = vmatprep.subr.mxu0 0.0
    %2846 = vmatpush1.msra.mxu0 %v85
    %2847 = vmatprep.subr.mxu0 0.0
    %2848 = vmatpush1.msra.mxu0 %v84
    %2849 = vmatprep.subr.mxu0 0.0
    %2850 = vmatpush1.msra.mxu0 %v83
    %2851 = vmatprep.subr.mxu0 0.0
    %2852 = vmatpush1.msra.mxu0 %v82
    %2853 = vmatprep.subr.mxu0 0.0
    %2854 = vmatpush1.msra.mxu0 %v81
    %2855 = vmatprep.subr.mxu0 0.0
    %2856 = vmatpush1.msra.mxu0 %v80
    %2857 = vmatprep.subr.mxu0 0.0
    %2858 = vmatpush1.msra.mxu0 %v79
    %2859 = vmatprep.subr.mxu0 0.0
    %2860 = vmatpush2.msra.mxu0 0.0
    %2861 = vmatprep.subr.mxu0 0.0
    %2862 = vmatpush2.msra.mxu0 0.0
    %2863 = vmatprep.subr.mxu0 0.0
    %2864 = vmatpush2.msra.mxu0 0.0
    %2865 = vmatprep.subr.mxu0 0.0
    %2866 = vmatpush2.msra.mxu0 0.0
    %2867 = vmatprep.subr.mxu0 0.0
    %2868 = vmatpush2.msra.mxu0 0.0
    %2869 = vmatprep.subr.mxu0 0.0
    %2870 = vmatpush2.msra.mxu0 0.0
    %2871 = vmatprep.subr.mxu0 0.0
    %2872 = vmatpush2.msra.mxu0 0.0
    %2873 = vmatprep.subr.mxu0 0.0
    %2874 = vmatpush2.msra.mxu0 0.0
    %2875 = vmatprep.subr.mxu0 0.0
    %2876 = vmatpush2.msra.mxu0 0.0
    %2877 = vmatprep.subr.mxu0 0.0
    %2878 = vmatpush2.msra.mxu0 0.0
    %2879 = vmatprep.subr.mxu0 0.0
    %2880 = vmatpush2.msra.mxu0 0.0
    %2881 = vmatprep.subr.mxu0 0.0
    %2882 = vmatpush2.msra.mxu0 0.0
    %2883 = vmatprep.subr.mxu0 0.0
    %2884 = vmatpush2.msra.mxu0 0.0
    %2885 = vmatprep.subr.mxu0 0.0
    %2886 = vmatpush2.msra.mxu0 0.0
    %2887 = vmatprep.subr.mxu0 0.0
    %2888 = vmatpush2.msra.mxu0 0.0
    %2889 = vmatprep.subr.mxu0 0.0
    %2890 = vmatpush2.msra.mxu0 0.0
    %2891 = vmatprep.mubr.f32.mxu0 0.0
    %2892 = vmatmul.mubr.f32.gmra.mxu0 %v2821
    %v2893 = vpop.f32.mrf.mxu0
    %v2894 = vadd.f32 %v2826, %v2893
    %v2895 = vpop.f32.mrf.mxu0
    %2896 = vmatprep.mubr.f32.mxu0 0.0
    %2897 = vmatmul.mubr.f32.gmra.mxu0 %v2822
    %v2898 = vpop.f32.mrf.mxu0
    %v2899 = vadd.f32 %v2826, %v2898
    %v2900 = vpop.f32.mrf.mxu0
    %2901 = vdwg.mxu0
    %v2902 = vmax.f32 %v2894, 0.0
    %v2903 = vmax.f32 %v2899, 0.0
    %v2904 = vlaneseq
    %v2905 = vshrl.u32 %v2904, 7
    %v2906 = vsub.s32 4, %v2905
    %v2907 = vrot.slane %v69, %v2906
    %2908 = vmatprep.subr.mxu0 0.0
    %2909 = vmatpush1.msra.mxu0 %v110
    %2910 = vmatprep.subr.mxu0 0.0
    %2911 = vmatpush1.msra.mxu0 %v109
    %2912 = vmatprep.subr.mxu0 0.0
    %2913 = vmatpush1.msra.mxu0 %v108
    %2914 = vmatprep.subr.mxu0 0.0
    %2915 = vmatpush1.msra.mxu0 %v107
    %2916 = vmatprep.subr.mxu0 0.0
    %2917 = vmatpush1.msra.mxu0 %v106
    %2918 = vmatprep.subr.mxu0 0.0
    %2919 = vmatpush1.msra.mxu0 %v105
    %2920 = vmatprep.subr.mxu0 0.0
    %2921 = vmatpush1.msra.mxu0 %v104
    %2922 = vmatprep.subr.mxu0 0.0
    %2923 = vmatpush1.msra.mxu0 %v103
    %2924 = vmatprep.subr.mxu0 0.0
    %2925 = vmatpush1.msra.mxu0 %v102
    %2926 = vmatprep.subr.mxu0 0.0
    %2927 = vmatpush1.msra.mxu0 %v101
    %2928 = vmatprep.subr.mxu0 0.0
    %2929 = vmatpush1.msra.mxu0 %v100
    %2930 = vmatprep.subr.mxu0 0.0
    %2931 = vmatpush1.msra.mxu0 %v99
    %2932 = vmatprep.subr.mxu0 0.0
    %2933 = vmatpush1.msra.mxu0 %v98
    %2934 = vmatprep.subr.mxu0 0.0
    %2935 = vmatpush1.msra.mxu0 %v97
    %2936 = vmatprep.subr.mxu0 0.0
    %2937 = vmatpush1.msra.mxu0 %v96
    %2938 = vmatprep.subr.mxu0 0.0
    %2939 = vmatpush1.msra.mxu0 %v95
    %2940 = vmatprep.subr.mxu0 0.0
    %2941 = vmatpush2.msra.mxu0 0.0
    %2942 = vmatprep.subr.mxu0 0.0
    %2943 = vmatpush2.msra.mxu0 0.0
    %2944 = vmatprep.subr.mxu0 0.0
    %2945 = vmatpush2.msra.mxu0 0.0
    %2946 = vmatprep.subr.mxu0 0.0
    %2947 = vmatpush2.msra.mxu0 0.0
    %2948 = vmatprep.subr.mxu0 0.0
    %2949 = vmatpush2.msra.mxu0 0.0
    %2950 = vmatprep.subr.mxu0 0.0
    %2951 = vmatpush2.msra.mxu0 0.0
    %2952 = vmatprep.subr.mxu0 0.0
    %2953 = vmatpush2.msra.mxu0 0.0
    %2954 = vmatprep.subr.mxu0 0.0
    %2955 = vmatpush2.msra.mxu0 0.0
    %2956 = vmatprep.subr.mxu0 0.0
    %2957 = vmatpush2.msra.mxu0 0.0
    %2958 = vmatprep.subr.mxu0 0.0
    %2959 = vmatpush2.msra.mxu0 0.0
    %2960 = vmatprep.subr.mxu0 0.0
    %2961 = vmatpush2.msra.mxu0 0.0
    %2962 = vmatprep.subr.mxu0 0.0
    %2963 = vmatpush2.msra.mxu0 0.0
    %2964 = vmatprep.subr.mxu0 0.0
    %2965 = vmatpush2.msra.mxu0 0.0
    %2966 = vmatprep.subr.mxu0 0.0
    %2967 = vmatpush2.msra.mxu0 0.0
    %2968 = vmatprep.subr.mxu0 0.0
    %2969 = vmatpush2.msra.mxu0 0.0
    %2970 = vmatprep.subr.mxu0 0.0
    %2971 = vmatpush2.msra.mxu0 0.0
    %2972 = vmatprep.mubr.f32.mxu0 0.0
    %2973 = vmatmul.mubr.f32.gmra.mxu0 %v2902
    %v2974 = vpop.f32.mrf.mxu0
    %v2975 = vadd.f32 %v2907, %v2974
    %v2976 = vpop.f32.mrf.mxu0
    %2977 = vmatprep.mubr.f32.mxu0 0.0
    %2978 = vmatmul.mubr.f32.gmra.mxu0 %v2903
    %v2979 = vpop.f32.mrf.mxu0
    %v2980 = vadd.f32 %v2907, %v2979
    %v2981 = vpop.f32.mrf.mxu0
    %2982 = vdwg.mxu0
    %2983 = vmax.xlane.f32.xlu0 %v2975
    %v2984 = vpop.xlane.xlu0 %2983
    %2985 = vmax.xlane.f32.xlu0 %v2980
    %v2986 = vpop.xlane.xlu0 %2985
    %v2987 = vsub.f32 %v2975, %v2984
    %v2988 = vsub.f32 %v2980, %v2986
    %v2989 = vmul.f32 %v2987, 1.442695
    %v2990 = vpow.pop %v2989
    %v2991 = vmul.f32 %v2988, 1.442695
    %v2992 = vpow.pop %v2991
    %2993 = vadd.xlane.f32.xlu0 %v2990
    %v2994 = vpop.xlane.xlu0 %2993
    %2995 = vadd.xlane.f32.xlu0 %v2992
    %v2996 = vpop.xlane.xlu0 %2995
    %v2997 = vrcp.pop %v2994
    %v2998 = vmul.f32 %v2990, %v2997
    %v2999 = vrcp.pop %v2996
    %v3000 = vmul.f32 %v2992, %v2999
    %3001 = vst [vmem:[%s6] sm:$0xff] %v2998
    %3002 = vst [vmem:[%s6 + $0x8] sm:$0xff] %v3000
    // Predicated region
    $region30: #{gcn_forward_fused.1} parent=1 // pred_check
      _
    $region31: #{gcn_forward_fused.1} parent=1 // pred_check_branch
      %3004 = sbr.rel (0) target = $region33
    $region32: #{gcn_forward_fused.1} parent=1 // pred_region
      _
    $region33: #{gcn_forward_fused.1} parent=1 // pred_fallthru
      _
    // Predicated region
    $region34: #{gcn_forward_fused.1} parent=1 // pred_check
      _
    $region35: #{gcn_forward_fused.1} parent=1 // pred_check_branch
      %3006 = sbr.rel (0) target = $region37
    $region36: #{gcn_forward_fused.1} parent=1 // pred_region
      _
    $region37: #{gcn_forward_fused.1} parent=1 // pred_fallthru
      _
    %3007 = vsyncpa [#allocation4], 1

</llo_original>
